<compile_context>
chip_gen: v7x
topology: tpu7x:2x2x1
jax: 0.10.0
libtpu: 0.0.40
codegen_flags: <defaults>
</compile_context>

<pallas_src>
import math
import numpy as np
import jax
import jax.numpy as jnp
from jax.experimental import pallas as pl
from jax.experimental.pallas import tpu as pltpu


def _round_up(x, m):
    return ((x + m - 1) // m) * m


def _is_v7x():
    """Best-effort TPU-generation probe (v7x: 2 TensorCores, 64 MiB VMEM/TC)."""
    try:
        kind = jax.devices()[0].device_kind.lower()
    except Exception:
        return False
    return "7" in kind


def _radon_system_matrix(W, thetas_deg):
    """Dense operator equivalent to PyTorch affine_grid + bilinear grid_sample
    (align_corners=False, zeros padding) followed by sum over output rows.
    Returns float32 array of shape (W*W, W*T), columns ordered (w_out, t)."""
    T = len(thetas_deg)
    P = W * W
    coords = (2.0 * np.arange(W, dtype=np.float64) + 1.0) / W - 1.0
    xg = coords[None, :]          # varies with w_out (x / width)
    yg = coords[:, None]          # varies with h_out (y / height)
    w_idx = np.broadcast_to(np.arange(W)[None, :], (W, W))
    K = np.zeros((T, P, W), dtype=np.float64)   # (t, h_in*W + w_in, w_out)
    for t, theta_deg in enumerate(thetas_deg):
        th = float(theta_deg) * math.pi / 180.0
        c, s = math.cos(th), math.sin(th)
        gx = c * xg + s * yg
        gy = -s * xg + c * yg
        ix = ((gx + 1.0) * W - 1.0) / 2.0
        iy = ((gy + 1.0) * W - 1.0) / 2.0
        ix0 = np.floor(ix)
        iy0 = np.floor(iy)
        fx = ix - ix0
        fy = iy - iy0
        for dy, wy in ((0, 1.0 - fy), (1, fy)):
            for dx, wx in ((0, 1.0 - fx), (1, fx)):
                xi = ix0 + dx
                yi = iy0 + dy
                valid = (xi >= 0) & (xi <= W - 1) & (yi >= 0) & (yi <= W - 1)
                wgt = np.where(valid, wx * wy, 0.0)
                xi_c = np.clip(xi, 0, W - 1).astype(np.int64)
                yi_c = np.clip(yi, 0, W - 1).astype(np.int64)
                p = yi_c * W + xi_c
                np.add.at(K[t], (p, w_idx), wgt)   # sums over h_out implicitly
    A = np.transpose(K, (1, 2, 0)).reshape(P, W * T)
    return A.astype(np.float32)


def _mm_kernel_single_k(x_ref, a_ref, o_ref):
    # Whole K in one block: the dot writes straight into o_ref.
    # x is cast to bf16 in-register (free VPU work); A is already bf16; the
    # MXU accumulates in f32.
    o_ref[...] = jnp.dot(x_ref[...].astype(jnp.bfloat16), a_ref[...],
                         preferred_element_type=jnp.float32)


def _mm_kernel_multi_k(x_ref, a_ref, o_ref, acc_ref):
    @pl.when(pl.program_id(2) == 0)
    def _():
        acc_ref[...] = jnp.zeros_like(acc_ref)

    acc_ref[...] += jnp.dot(x_ref[...].astype(jnp.bfloat16), a_ref[...],
                            preferred_element_type=jnp.float32)

    @pl.when(pl.program_id(2) == pl.num_programs(2) - 1)
    def _():
        o_ref[...] = acc_ref[...]


class RadonPallas:
    """Pallas TPU implementation of Radon.forward (circle=True, scikit=False)."""

    def __init__(self, in_size, theta=None):
        if theta is None:
            theta = np.arange(180)
        self.theta = np.asarray(theta)
        self.W = int(in_size)
        self.T = int(len(self.theta))
        self.P = self.W * self.W
        self.Ncols = self.W * self.T
        self._v7x = _is_v7x()

        # Constant linear operator (setup time, plain numpy).
        self._A_np = _radon_system_matrix(self.W, self.theta)   # (P, Ncols) f32

        # K (contraction) tiling: a single block whenever it fits.
        self.K_pad = _round_up(self.P, 128)
        if self.K_pad <= 2048:
            self.tk = self.K_pad
        else:
            self.tk = 512
            self.K_pad = _round_up(self.K_pad, self.tk)

        # N tiling: one full-width lane-dense block on single-TC chips
        # (v5e/v6e: no padded columns, no extra pipeline steps); on v7x split
        # 4-way so each of the 2 TensorCores gets >=2 pipeline steps and the
        # A DMA can overlap the dot.
        ncols_128 = _round_up(self.Ncols, 128)
        if self._v7x and ncols_128 >= 1024:
            tn = _round_up(pl.cdiv(self.Ncols, 4), 128)
        else:
            tn = ncols_128
        self.tn = int(min(tn, 3072))
        self.n_steps = pl.cdiv(self.Ncols, self.tn)
        self.N_pad = self.n_steps * self.tn

        # Pad + cast the constant operator ONCE at setup. bf16 halves the HBM
        # bytes of the dominant operand and enables the native bf16 MXU path
        # (accumulation stays f32 inside the kernel).
        A_p = np.zeros((self.K_pad, self.N_pad), dtype=np.float32)
        A_p[:self.P, :self.Ncols] = self._A_np
        self.A_padded = jnp.asarray(A_p, dtype=jnp.bfloat16)

        self._fwd_cache = {}

    # ------------------------------------------------------------------ #

    def _build_fwd(self, B):
        P, Ncols = self.P, self.Ncols
        K_pad, N_pad = self.K_pad, self.N_pad
        tk, tn = self.tk, self.tn
        n_steps = self.n_steps
        k_steps = K_pad // tk
        use_acc = k_steps > 1

        # VMEM budgets: v7x has only 64 MiB per TensorCore.
        tile_budget = (28 if self._v7x else 48) * 1024 * 1024
        scoped_cap = (44 if self._v7x else 100) * 1024 * 1024

        def footprint(tm):
            if use_acc:
                return (2 * (tm * tk * 4 + tk * tn * 2 + tm * tn * 4)
                        + tm * tn * 4)
            return 2 * (tm * K_pad * 4 + K_pad * tn * 2 + tm * tn * 4)

        # Large tm (up to 1024, budget-checked): keeps the MXU full and, on
        # the multi-K path, cuts how often A is re-streamed from HBM.
        tm = min(_round_up(max(B, 1), 8), 1024)
        while tm > 8 and footprint(tm) > tile_budget:
            tm = max(8, _round_up(tm // 2, 8))
        m_steps = pl.cdiv(B, tm)

        need = footprint(tm)
        vmem_limit = None
        if need + 2 * 1024 * 1024 > 16 * 1024 * 1024:
            vmem_limit = int(min(need + 4 * 1024 * 1024, scoped_cap))

        cost = pl.CostEstimate(
            flops=2 * B * P * Ncols,
            transcendentals=0,
            bytes_accessed=B * K_pad * 4 + K_pad * N_pad * 2 + B * Ncols * 4)

        if not use_acc:
            x_bytes = B * K_pad * 4
            a_bytes = K_pad * N_pad * 2
            if x_bytes <= a_bytes:
                # A (larger operand) resident across the inner m axis: its
                # block index is unchanged between consecutive steps, so
                # Pallas skips the re-DMA -> A streamed from HBM once.
                grid = (n_steps, m_steps)
                x_map = lambda j, i: (i, 0)
                a_map = lambda j, i: (0, j)
                o_map = lambda j, i: (i, j)
            else:
                # x is the larger operand: keep its block resident across n.
                grid = (m_steps, n_steps)
                x_map = lambda i, j: (i, 0)
                a_map = lambda i, j: (0, j)
                o_map = lambda i, j: (i, j)
            grid_spec = pltpu.PrefetchScalarGridSpec(
                num_scalar_prefetch=0,
                grid=grid,
                in_specs=[pl.BlockSpec((tm, K_pad), x_map),
                          pl.BlockSpec((K_pad, tn), a_map)],
                out_specs=pl.BlockSpec((tm, tn), o_map))
            kernel = _mm_kernel_single_k
            sem = ("parallel", "parallel")
        else:
            grid_spec = pltpu.PrefetchScalarGridSpec(
                num_scalar_prefetch=0,
                grid=(m_steps, n_steps, k_steps),
                in_specs=[pl.BlockSpec((tm, tk), lambda i, j, k: (i, k)),
                          pl.BlockSpec((tk, tn), lambda i, j, k: (k, j))],
                out_specs=pl.BlockSpec((tm, tn), lambda i, j, k: (i, j)),
                scratch_shapes=[pltpu.VMEM((tm, tn), jnp.float32)])
            kernel = _mm_kernel_multi_k
            sem = ("parallel", "parallel", "arbitrary")

        call = pl.pallas_call(
            kernel,
            out_shape=jax.ShapeDtypeStruct((B, Ncols), jnp.float32),
            grid_spec=grid_spec,
            compiler_params=pltpu.CompilerParams(
                dimension_semantics=sem, vmem_limit_bytes=vmem_limit),
            cost_estimate=cost)

        def fwd(x_flat, a_padded):
            x_flat = x_flat.astype(jnp.float32)
            if K_pad > P:
                # Explicit zero K-pad (A's zero rows alone would not protect
                # against non-finite garbage in the tail). No M padding and no
                # output slice: ragged edge blocks are masked by Pallas.
                x_flat = jnp.pad(x_flat, ((0, 0), (0, K_pad - P)))
            return call(x_flat, a_padded)

        return jax.jit(fwd)

    # ------------------------------------------------------------------ #

    def __call__(self, x):
        N, C, W, H = x.shape
        assert W == H == self.W
        B = N * C
        fwd = self._fwd_cache.get(B)
        if fwd is None:
            fwd = self._build_fwd(B)
            self._fwd_cache[B] = fwd
        out = fwd(jnp.reshape(x, (B, W * H)), self.A_padded)
        return jnp.reshape(out, (N, C, W, self.T))


if __name__ == "__main__":
    key = jax.random.PRNGKey(0)
    N, C, W = 2, 4, 16
    thetas = np.arange(180)                    # module default: torch.arange(180)

    x = jax.random.normal(key, (N, C, W, W), dtype=jnp.float32)

    radon = RadonPallas(W, thetas)
    out = jax.block_until_ready(radon(x))

    assert out.shape == (N, C, W, len(thetas))
    assert out.dtype == jnp.float32

    # Reference 1 (tight): same linear operator evaluated with the same bf16
    # operand storage -> checks the kernel itself.
    x_flat = np.asarray(jnp.reshape(x, (N * C, W * W)), dtype=np.float32)
    A_bf16 = np.asarray(radon.A_padded[:radon.P, :radon.Ncols]
                        .astype(jnp.float32))
    x_bf16 = np.asarray(jnp.asarray(x_flat, dtype=jnp.bfloat16)
                        .astype(jnp.float32))
    ref_bf16 = (x_bf16 @ A_bf16).reshape(N, C, W, len(thetas))
    assert np.allclose(np.asarray(out), ref_bf16, rtol=2e-3, atol=2e-3)

    # Reference 2 (loose): full-precision operator -> checks the Radon
    # semantics; bf16 operand storage introduces ~1e-2 absolute error here.
    ref_f32 = (x_flat.astype(np.float64)
               @ radon._A_np.astype(np.float64)).reshape(N, C, W, len(thetas))
    assert np.allclose(np.asarray(out), ref_f32, rtol=1e-1, atol=1e-1)

    print("KERNEL_OK")
</pallas_src>

<mosaic_0001>
module attributes {stable_mosaic.version = 11 : i64} {
  func.func @_mm_kernel_single_k(%arg0: i32, %arg1: i32, %arg2: memref<8x256xf32, #tpu.memory_space<vmem>>, %arg3: memref<256x2944xbf16, #tpu.memory_space<vmem>>, %arg4: memref<8x2944xf32, #tpu.memory_space<vmem>>) attributes {dimension_semantics = [#tpu.dimension_semantics<parallel>, #tpu.dimension_semantics<parallel>], iteration_bounds = array<i64: 1, 1>, scalar_prefetch = 0 : i64, scratch_operands = 0 : i64, tpu.core_type = #tpu.core_type<tc>, window_params = [{transform_indices = @transform_0, window_bounds = array<i64: 8, 256>}, {transform_indices = @transform_1, window_bounds = array<i64: 256, 2944>}, {transform_indices = @transform_2, window_bounds = array<i64: 8, 2944>}]} {
    %c0 = arith.constant 0 : index
    %c0_0 = arith.constant 0 : index
    %0 = vector.load %arg2[%c0, %c0_0] : memref<8x256xf32, #tpu.memory_space<vmem>>, vector<8x256xf32>
    %1 = arith.truncf %0 : vector<8x256xf32> to vector<8x256xbf16>
    %c0_1 = arith.constant 0 : index
    %c0_2 = arith.constant 0 : index
    %2 = vector.load %arg3[%c0_1, %c0_2] : memref<256x2944xbf16, #tpu.memory_space<vmem>>, vector<256x2944xbf16>
    %cst = arith.constant dense<0.000000e+00> : vector<8x2944xf32>
    %3 = tpu.matmul %1, %2, %cst {dimension_numbers = #tpu.dot_dimension_numbers<[1], [0], [0], [1], [0, 0, 1, 1], [], []>} : vector<8x256xbf16>, vector<256x2944xbf16>, vector<8x2944xf32> -> vector<8x2944xf32>
    %c0_3 = arith.constant 0 : index
    %c0_4 = arith.constant 0 : index
    %4 = vector.load %arg4[%c0_3, %c0_4] : memref<8x2944xf32, #tpu.memory_space<vmem>>, vector<8x2944xf32>
    tpu.vector_store %arg4[%c0_3, %c0_4], %3 {strides = array<i32>} : memref<8x2944xf32, #tpu.memory_space<vmem>>, vector<8x2944xf32>,
    return
  }
  func.func @transform_0(%arg0: i32, %arg1: i32) -> (i32, i32) {
    %c0_i32 = arith.constant 0 : i32
    %c0_i32_0 = arith.constant 0 : i32
    return %arg1, %c0_i32 : i32, i32
  }
  func.func @transform_1(%arg0: i32, %arg1: i32) -> (i32, i32) {
    %c0_i32 = arith.constant 0 : i32
    %c0_i32_0 = arith.constant 0 : i32
    return %c0_i32, %arg0 : i32, i32
  }
  func.func @transform_2(%arg0: i32, %arg1: i32) -> (i32, i32) {
    %c0_i32 = arith.constant 0 : i32
    return %arg1, %arg0 : i32, i32
  }
}

</mosaic_0001>

<llo_original>
// kernel: fwd.1
$region0: #{fwd.1}
  #allocation0 [shape = 'u32[]', space=smem, size = 0x4, offset = 0x4, fixed_abs, tag = 'smem constant byte address 0x4 - core index']
  #allocation1 [shape = 'u32[144,128]{1,0:T(1,128)}', space=vmem, size = 0x12000, scoped, tag = 'internal scratch']
  %s0 = inlined_call_operand.hbm [shape: f32[8,256], index: 0, kind: input, shape index: {}]
  %s1 = inlined_call_operand.hbm [shape: bf16[256,2944], index: 1, kind: input, shape index: {}]
  %s2 = inlined_call_operand.hbm [shape: f32[8,2880], index: 2, kind: output, shape index: {}]
  %s3 = sld [smem:[#allocation0]]
  $region26: #{fwd.1} parent=0
    _
  %s5 = ssub.s32 1, %s3
  %s6 = scalar_select 0, %s5, %s3
  $region1: #{fwd.1} parent=0
    #allocation2 [shape = 'u8[8192]{0}', space=vmem, size = 0x2000, scoped, tag = 'input window, operand 0, single buffered']
    #allocation3 [shape = 's32[1]{0}', space=sflag, size = 0x4, scoped, tag = 'scoped memory for fwd.1']
    #allocation4 [shape = 's32[1]{0}', space=sflag, size = 0x4, scoped, tag = 'scoped memory for fwd.1']
    #allocation5 [shape = 'u8[1507328]{0}', space=vmem, size = 0x170000, scoped, tag = 'input window, operand 1, single buffered']
    #allocation6 [shape = 's32[1]{0}', space=sflag, size = 0x4, scoped, tag = 'scoped memory for fwd.1']
    #allocation7 [shape = 'u8[94208]{0}', space=vmem, size = 0x17000, scoped, tag = 'output window, operand 0, single buffered']
    %7 = vsyncpa [#allocation3], 0
    %8 = vsyncpa [#allocation6], 0
    %9 = vsyncpa [#allocation4], 0
    // Predicated region
    $region2: #{fwd.1} parent=1 // pred_check
      _
    $region3: #{fwd.1} parent=1 // pred_check_branch
      %11 = sbr.rel (0) target = $region5
    $region4: #{fwd.1} parent=1 // pred_region
      %s13 = ssub.s32 256, 256
      %14 = vsyncadd [#allocation3], %s13
      %s16 = sshll.u32 [#allocation2], 4
      %s17 = int_to_ptr.vmem [resolvable:$true] %s16
      %19 = dma.hbm_to_vmem [thread:$0]  %s0, 256, %s17, [#allocation3]
    $region5: #{fwd.1} parent=1 // pred_fallthru
      _
    // Predicated region
    $region6: #{fwd.1} parent=1 // pred_check
      _
    $region7: #{fwd.1} parent=1 // pred_check_branch
      %21 = sbr.rel (0) target = $region9
    $region8: #{fwd.1} parent=1 // pred_region
      %s23 = ssub.s32 47104, 47104
      %24 = vsyncadd [#allocation6], %s23
      %s25 = sshll.u32 [#allocation5], 4
      %s26 = int_to_ptr.vmem [resolvable:$true] %s25
      %31 = dma.hbm_to_vmem [thread:$0]  %s1, 47104, %s26, [#allocation6], 1472, 1472, 92
    $region9: #{fwd.1} parent=1 // pred_fallthru
      _
    // Predicated region
    $region10: #{fwd.1} parent=1 // pred_check
      _
    $region11: #{fwd.1} parent=1 // pred_check_branch
      %33 = sbr.rel (0) target = $region13
    $region12: #{fwd.1} parent=1 // pred_region
      %34 = dma.done [#allocation3], 256
    $region13: #{fwd.1} parent=1 // pred_fallthru
      _
    // Predicated region
    $region14: #{fwd.1} parent=1 // pred_check
      _
    $region15: #{fwd.1} parent=1 // pred_check_branch
      %36 = sbr.rel (0) target = $region17
    $region16: #{fwd.1} parent=1 // pred_region
      %37 = dma.done [#allocation6], 47104
    $region17: #{fwd.1} parent=1 // pred_fallthru
      _
    %v39 = vld [vmem:[#allocation2] sm:$0xff]
    %v40 = vld [vmem:[#allocation2 + $0x8] sm:$0xff]
    %v41 = vpack.c.bf16 %v39, %v39
    %v42 = vpack.c.bf16 %v40, %v40
    %v43 = vld [vmem:[#allocation5] sm:$0xff]
    %v44 = vld [vmem:[#allocation5 + $0x8] sm:$0xff]
    %v45 = vld [vmem:[#allocation5 + $0x10] sm:$0xff]
    %v46 = vld [vmem:[#allocation5 + $0x18] sm:$0xff]
    %v47 = vld [vmem:[#allocation5 + $0x20] sm:$0xff]
    %v48 = vld [vmem:[#allocation5 + $0x28] sm:$0xff]
    %v49 = vld [vmem:[#allocation5 + $0x30] sm:$0xff]
    %v50 = vld [vmem:[#allocation5 + $0x38] sm:$0xff]
    %v51 = vld [vmem:[#allocation5 + $0x40] sm:$0xff]
    %v52 = vld [vmem:[#allocation5 + $0x48] sm:$0xff]
    %v53 = vld [vmem:[#allocation5 + $0x50] sm:$0xff]
    %v54 = vld [vmem:[#allocation5 + $0x58] sm:$0xf]
    %v55 = vld [vmem:[#allocation5 + $0x5c] sm:$0xff]
    %v56 = vld [vmem:[#allocation5 + $0x64] sm:$0xff]
    %v57 = vld [vmem:[#allocation5 + $0x6c] sm:$0xff]
    %v58 = vld [vmem:[#allocation5 + $0x74] sm:$0xff]
    %v59 = vld [vmem:[#allocation5 + $0x7c] sm:$0xff]
    %v60 = vld [vmem:[#allocation5 + $0x84] sm:$0xff]
    %v61 = vld [vmem:[#allocation5 + $0x8c] sm:$0xff]
    %v62 = vld [vmem:[#allocation5 + $0x94] sm:$0xff]
    %v63 = vld [vmem:[#allocation5 + $0x9c] sm:$0xff]
    %v64 = vld [vmem:[#allocation5 + $0xa4] sm:$0xff]
    %v65 = vld [vmem:[#allocation5 + $0xac] sm:$0xff]
    %v66 = vld [vmem:[#allocation5 + $0xb4] sm:$0xf]
    %v67 = vld [vmem:[#allocation5 + $0xb8] sm:$0xff]
    %v68 = vld [vmem:[#allocation5 + $0xc0] sm:$0xff]
    %v69 = vld [vmem:[#allocation5 + $0xc8] sm:$0xff]
    %v70 = vld [vmem:[#allocation5 + $0xd0] sm:$0xff]
    %v71 = vld [vmem:[#allocation5 + $0xd8] sm:$0xff]
    %v72 = vld [vmem:[#allocation5 + $0xe0] sm:$0xff]
    %v73 = vld [vmem:[#allocation5 + $0xe8] sm:$0xff]
    %v74 = vld [vmem:[#allocation5 + $0xf0] sm:$0xff]
    %v75 = vld [vmem:[#allocation5 + $0xf8] sm:$0xff]
    %v76 = vld [vmem:[#allocation5 + $0x100] sm:$0xff]
    %v77 = vld [vmem:[#allocation5 + $0x108] sm:$0xff]
    %v78 = vld [vmem:[#allocation5 + $0x110] sm:$0xf]
    %v79 = vld [vmem:[#allocation5 + $0x114] sm:$0xff]
    %v80 = vld [vmem:[#allocation5 + $0x11c] sm:$0xff]
    %v81 = vld [vmem:[#allocation5 + $0x124] sm:$0xff]
    %v82 = vld [vmem:[#allocation5 + $0x12c] sm:$0xff]
    %v83 = vld [vmem:[#allocation5 + $0x134] sm:$0xff]
    %v84 = vld [vmem:[#allocation5 + $0x13c] sm:$0xff]
    %v85 = vld [vmem:[#allocation5 + $0x144] sm:$0xff]
    %v86 = vld [vmem:[#allocation5 + $0x14c] sm:$0xff]
    %v87 = vld [vmem:[#allocation5 + $0x154] sm:$0xff]
    %v88 = vld [vmem:[#allocation5 + $0x15c] sm:$0xff]
    %v89 = vld [vmem:[#allocation5 + $0x164] sm:$0xff]
    %v90 = vld [vmem:[#allocation5 + $0x16c] sm:$0xf]
    %v91 = vld [vmem:[#allocation5 + $0x170] sm:$0xff]
    %v92 = vld [vmem:[#allocation5 + $0x178] sm:$0xff]
    %v93 = vld [vmem:[#allocation5 + $0x180] sm:$0xff]
    %v94 = vld [vmem:[#allocation5 + $0x188] sm:$0xff]
    %v95 = vld [vmem:[#allocation5 + $0x190] sm:$0xff]
    %v96 = vld [vmem:[#allocation5 + $0x198] sm:$0xff]
    %v97 = vld [vmem:[#allocation5 + $0x1a0] sm:$0xff]
    %v98 = vld [vmem:[#allocation5 + $0x1a8] sm:$0xff]
    %v99 = vld [vmem:[#allocation5 + $0x1b0] sm:$0xff]
    %v100 = vld [vmem:[#allocation5 + $0x1b8] sm:$0xff]
    %v101 = vld [vmem:[#allocation5 + $0x1c0] sm:$0xff]
    %v102 = vld [vmem:[#allocation5 + $0x1c8] sm:$0xf]
    %v103 = vld [vmem:[#allocation5 + $0x1cc] sm:$0xff]
    %v104 = vld [vmem:[#allocation5 + $0x1d4] sm:$0xff]
    %v105 = vld [vmem:[#allocation5 + $0x1dc] sm:$0xff]
    %v106 = vld [vmem:[#allocation5 + $0x1e4] sm:$0xff]
    %v107 = vld [vmem:[#allocation5 + $0x1ec] sm:$0xff]
    %v108 = vld [vmem:[#allocation5 + $0x1f4] sm:$0xff]
    %v109 = vld [vmem:[#allocation5 + $0x1fc] sm:$0xff]
    %v110 = vld [vmem:[#allocation5 + $0x204] sm:$0xff]
    %v111 = vld [vmem:[#allocation5 + $0x20c] sm:$0xff]
    %v112 = vld [vmem:[#allocation5 + $0x214] sm:$0xff]
    %v113 = vld [vmem:[#allocation5 + $0x21c] sm:$0xff]
    %v114 = vld [vmem:[#allocation5 + $0x224] sm:$0xf]
    %v115 = vld [vmem:[#allocation5 + $0x228] sm:$0xff]
    %v116 = vld [vmem:[#allocation5 + $0x230] sm:$0xff]
    %v117 = vld [vmem:[#allocation5 + $0x238] sm:$0xff]
    %v118 = vld [vmem:[#allocation5 + $0x240] sm:$0xff]
    %v119 = vld [vmem:[#allocation5 + $0x248] sm:$0xff]
    %v120 = vld [vmem:[#allocation5 + $0x250] sm:$0xff]
    %v121 = vld [vmem:[#allocation5 + $0x258] sm:$0xff]
    %v122 = vld [vmem:[#allocation5 + $0x260] sm:$0xff]
    %v123 = vld [vmem:[#allocation5 + $0x268] sm:$0xff]
    %v124 = vld [vmem:[#allocation5 + $0x270] sm:$0xff]
    %v125 = vld [vmem:[#allocation5 + $0x278] sm:$0xff]
    %v126 = vld [vmem:[#allocation5 + $0x280] sm:$0xf]
    %v127 = vld [vmem:[#allocation5 + $0x284] sm:$0xff]
    %v128 = vld [vmem:[#allocation5 + $0x28c] sm:$0xff]
    %v129 = vld [vmem:[#allocation5 + $0x294] sm:$0xff]
    %v130 = vld [vmem:[#allocation5 + $0x29c] sm:$0xff]
    %v131 = vld [vmem:[#allocation5 + $0x2a4] sm:$0xff]
    %v132 = vld [vmem:[#allocation5 + $0x2ac] sm:$0xff]
    %v133 = vld [vmem:[#allocation5 + $0x2b4] sm:$0xff]
    %v134 = vld [vmem:[#allocation5 + $0x2bc] sm:$0xff]
    %v135 = vld [vmem:[#allocation5 + $0x2c4] sm:$0xff]
    %v136 = vld [vmem:[#allocation5 + $0x2cc] sm:$0xff]
    %v137 = vld [vmem:[#allocation5 + $0x2d4] sm:$0xff]
    %v138 = vld [vmem:[#allocation5 + $0x2dc] sm:$0xf]
    %v139 = vld [vmem:[#allocation5 + $0x2e0] sm:$0xff]
    %v140 = vld [vmem:[#allocation5 + $0x2e8] sm:$0xff]
    %v141 = vld [vmem:[#allocation5 + $0x2f0] sm:$0xff]
    %v142 = vld [vmem:[#allocation5 + $0x2f8] sm:$0xff]
    %v143 = vld [vmem:[#allocation5 + $0x300] sm:$0xff]
    %v144 = vld [vmem:[#allocation5 + $0x308] sm:$0xff]
    %v145 = vld [vmem:[#allocation5 + $0x310] sm:$0xff]
    %v146 = vld [vmem:[#allocation5 + $0x318] sm:$0xff]
    %v147 = vld [vmem:[#allocation5 + $0x320] sm:$0xff]
    %v148 = vld [vmem:[#allocation5 + $0x328] sm:$0xff]
    %v149 = vld [vmem:[#allocation5 + $0x330] sm:$0xff]
    %v150 = vld [vmem:[#allocation5 + $0x338] sm:$0xf]
    %v151 = vld [vmem:[#allocation5 + $0x33c] sm:$0xff]
    %v152 = vld [vmem:[#allocation5 + $0x344] sm:$0xff]
    %v153 = vld [vmem:[#allocation5 + $0x34c] sm:$0xff]
    %v154 = vld [vmem:[#allocation5 + $0x354] sm:$0xff]
    %v155 = vld [vmem:[#allocation5 + $0x35c] sm:$0xff]
    %v156 = vld [vmem:[#allocation5 + $0x364] sm:$0xff]
    %v157 = vld [vmem:[#allocation5 + $0x36c] sm:$0xff]
    %v158 = vld [vmem:[#allocation5 + $0x374] sm:$0xff]
    %v159 = vld [vmem:[#allocation5 + $0x37c] sm:$0xff]
    %v160 = vld [vmem:[#allocation5 + $0x384] sm:$0xff]
    %v161 = vld [vmem:[#allocation5 + $0x38c] sm:$0xff]
    %v162 = vld [vmem:[#allocation5 + $0x394] sm:$0xf]
    %v163 = vld [vmem:[#allocation5 + $0x398] sm:$0xff]
    %v164 = vld [vmem:[#allocation5 + $0x3a0] sm:$0xff]
    %v165 = vld [vmem:[#allocation5 + $0x3a8] sm:$0xff]
    %v166 = vld [vmem:[#allocation5 + $0x3b0] sm:$0xff]
    %v167 = vld [vmem:[#allocation5 + $0x3b8] sm:$0xff]
    %v168 = vld [vmem:[#allocation5 + $0x3c0] sm:$0xff]
    %v169 = vld [vmem:[#allocation5 + $0x3c8] sm:$0xff]
    %v170 = vld [vmem:[#allocation5 + $0x3d0] sm:$0xff]
    %v171 = vld [vmem:[#allocation5 + $0x3d8] sm:$0xff]
    %v172 = vld [vmem:[#allocation5 + $0x3e0] sm:$0xff]
    %v173 = vld [vmem:[#allocation5 + $0x3e8] sm:$0xff]
    %v174 = vld [vmem:[#allocation5 + $0x3f0] sm:$0xf]
    %v175 = vld [vmem:[#allocation5 + $0x3f4] sm:$0xff]
    %v176 = vld [vmem:[#allocation5 + $0x3fc] sm:$0xff]
    %v177 = vld [vmem:[#allocation5 + $0x404] sm:$0xff]
    %v178 = vld [vmem:[#allocation5 + $0x40c] sm:$0xff]
    %v179 = vld [vmem:[#allocation5 + $0x414] sm:$0xff]
    %v180 = vld [vmem:[#allocation5 + $0x41c] sm:$0xff]
    %v181 = vld [vmem:[#allocation5 + $0x424] sm:$0xff]
    %v182 = vld [vmem:[#allocation5 + $0x42c] sm:$0xff]
    %v183 = vld [vmem:[#allocation5 + $0x434] sm:$0xff]
    %v184 = vld [vmem:[#allocation5 + $0x43c] sm:$0xff]
    %v185 = vld [vmem:[#allocation5 + $0x444] sm:$0xff]
    %v186 = vld [vmem:[#allocation5 + $0x44c] sm:$0xf]
    %v187 = vld [vmem:[#allocation5 + $0x450] sm:$0xff]
    %v188 = vld [vmem:[#allocation5 + $0x458] sm:$0xff]
    %v189 = vld [vmem:[#allocation5 + $0x460] sm:$0xff]
    %v190 = vld [vmem:[#allocation5 + $0x468] sm:$0xff]
    %v191 = vld [vmem:[#allocation5 + $0x470] sm:$0xff]
    %v192 = vld [vmem:[#allocation5 + $0x478] sm:$0xff]
    %v193 = vld [vmem:[#allocation5 + $0x480] sm:$0xff]
    %v194 = vld [vmem:[#allocation5 + $0x488] sm:$0xff]
    %v195 = vld [vmem:[#allocation5 + $0x490] sm:$0xff]
    %v196 = vld [vmem:[#allocation5 + $0x498] sm:$0xff]
    %v197 = vld [vmem:[#allocation5 + $0x4a0] sm:$0xff]
    %v198 = vld [vmem:[#allocation5 + $0x4a8] sm:$0xf]
    %v199 = vld [vmem:[#allocation5 + $0x4ac] sm:$0xff]
    %v200 = vld [vmem:[#allocation5 + $0x4b4] sm:$0xff]
    %v201 = vld [vmem:[#allocation5 + $0x4bc] sm:$0xff]
    %v202 = vld [vmem:[#allocation5 + $0x4c4] sm:$0xff]
    %v203 = vld [vmem:[#allocation5 + $0x4cc] sm:$0xff]
    %v204 = vld [vmem:[#allocation5 + $0x4d4] sm:$0xff]
    %v205 = vld [vmem:[#allocation5 + $0x4dc] sm:$0xff]
    %v206 = vld [vmem:[#allocation5 + $0x4e4] sm:$0xff]
    %v207 = vld [vmem:[#allocation5 + $0x4ec] sm:$0xff]
    %v208 = vld [vmem:[#allocation5 + $0x4f4] sm:$0xff]
    %v209 = vld [vmem:[#allocation5 + $0x4fc] sm:$0xff]
    %v210 = vld [vmem:[#allocation5 + $0x504] sm:$0xf]
    %v211 = vld [vmem:[#allocation5 + $0x508] sm:$0xff]
    %v212 = vld [vmem:[#allocation5 + $0x510] sm:$0xff]
    %v213 = vld [vmem:[#allocation5 + $0x518] sm:$0xff]
    %v214 = vld [vmem:[#allocation5 + $0x520] sm:$0xff]
    %v215 = vld [vmem:[#allocation5 + $0x528] sm:$0xff]
    %v216 = vld [vmem:[#allocation5 + $0x530] sm:$0xff]
    %v217 = vld [vmem:[#allocation5 + $0x538] sm:$0xff]
    %v218 = vld [vmem:[#allocation5 + $0x540] sm:$0xff]
    %v219 = vld [vmem:[#allocation5 + $0x548] sm:$0xff]
    %v220 = vld [vmem:[#allocation5 + $0x550] sm:$0xff]
    %v221 = vld [vmem:[#allocation5 + $0x558] sm:$0xff]
    %v222 = vld [vmem:[#allocation5 + $0x560] sm:$0xf]
    %v223 = vld [vmem:[#allocation5 + $0x564] sm:$0xff]
    %v224 = vld [vmem:[#allocation5 + $0x56c] sm:$0xff]
    %v225 = vld [vmem:[#allocation5 + $0x574] sm:$0xff]
    %v226 = vld [vmem:[#allocation5 + $0x57c] sm:$0xff]
    %v227 = vld [vmem:[#allocation5 + $0x584] sm:$0xff]
    %v228 = vld [vmem:[#allocation5 + $0x58c] sm:$0xff]
    %v229 = vld [vmem:[#allocation5 + $0x594] sm:$0xff]
    %v230 = vld [vmem:[#allocation5 + $0x59c] sm:$0xff]
    %v231 = vld [vmem:[#allocation5 + $0x5a4] sm:$0xff]
    %v232 = vld [vmem:[#allocation5 + $0x5ac] sm:$0xff]
    %v233 = vld [vmem:[#allocation5 + $0x5b4] sm:$0xff]
    %v234 = vld [vmem:[#allocation5 + $0x5bc] sm:$0xf]
    %v235 = vld [vmem:[#allocation5 + $0x5c0] sm:$0xff]
    %v236 = vld [vmem:[#allocation5 + $0x5c8] sm:$0xff]
    %v237 = vld [vmem:[#allocation5 + $0x5d0] sm:$0xff]
    %v238 = vld [vmem:[#allocation5 + $0x5d8] sm:$0xff]
    %v239 = vld [vmem:[#allocation5 + $0x5e0] sm:$0xff]
    %v240 = vld [vmem:[#allocation5 + $0x5e8] sm:$0xff]
    %v241 = vld [vmem:[#allocation5 + $0x5f0] sm:$0xff]
    %v242 = vld [vmem:[#allocation5 + $0x5f8] sm:$0xff]
    %v243 = vld [vmem:[#allocation5 + $0x600] sm:$0xff]
    %v244 = vld [vmem:[#allocation5 + $0x608] sm:$0xff]
    %v245 = vld [vmem:[#allocation5 + $0x610] sm:$0xff]
    %v246 = vld [vmem:[#allocation5 + $0x618] sm:$0xf]
    %v247 = vld [vmem:[#allocation5 + $0x61c] sm:$0xff]
    %v248 = vld [vmem:[#allocation5 + $0x624] sm:$0xff]
    %v249 = vld [vmem:[#allocation5 + $0x62c] sm:$0xff]
    %v250 = vld [vmem:[#allocation5 + $0x634] sm:$0xff]
    %v251 = vld [vmem:[#allocation5 + $0x63c] sm:$0xff]
    %v252 = vld [vmem:[#allocation5 + $0x644] sm:$0xff]
    %v253 = vld [vmem:[#allocation5 + $0x64c] sm:$0xff]
    %v254 = vld [vmem:[#allocation5 + $0x654] sm:$0xff]
    %v255 = vld [vmem:[#allocation5 + $0x65c] sm:$0xff]
    %v256 = vld [vmem:[#allocation5 + $0x664] sm:$0xff]
    %v257 = vld [vmem:[#allocation5 + $0x66c] sm:$0xff]
    %v258 = vld [vmem:[#allocation5 + $0x674] sm:$0xf]
    %v259 = vld [vmem:[#allocation5 + $0x678] sm:$0xff]
    %v260 = vld [vmem:[#allocation5 + $0x680] sm:$0xff]
    %v261 = vld [vmem:[#allocation5 + $0x688] sm:$0xff]
    %v262 = vld [vmem:[#allocation5 + $0x690] sm:$0xff]
    %v263 = vld [vmem:[#allocation5 + $0x698] sm:$0xff]
    %v264 = vld [vmem:[#allocation5 + $0x6a0] sm:$0xff]
    %v265 = vld [vmem:[#allocation5 + $0x6a8] sm:$0xff]
    %v266 = vld [vmem:[#allocation5 + $0x6b0] sm:$0xff]
    %v267 = vld [vmem:[#allocation5 + $0x6b8] sm:$0xff]
    %v268 = vld [vmem:[#allocation5 + $0x6c0] sm:$0xff]
    %v269 = vld [vmem:[#allocation5 + $0x6c8] sm:$0xff]
    %v270 = vld [vmem:[#allocation5 + $0x6d0] sm:$0xf]
    %v271 = vld [vmem:[#allocation5 + $0x6d4] sm:$0xff]
    %v272 = vld [vmem:[#allocation5 + $0x6dc] sm:$0xff]
    %v273 = vld [vmem:[#allocation5 + $0x6e4] sm:$0xff]
    %v274 = vld [vmem:[#allocation5 + $0x6ec] sm:$0xff]
    %v275 = vld [vmem:[#allocation5 + $0x6f4] sm:$0xff]
    %v276 = vld [vmem:[#allocation5 + $0x6fc] sm:$0xff]
    %v277 = vld [vmem:[#allocation5 + $0x704] sm:$0xff]
    %v278 = vld [vmem:[#allocation5 + $0x70c] sm:$0xff]
    %v279 = vld [vmem:[#allocation5 + $0x714] sm:$0xff]
    %v280 = vld [vmem:[#allocation5 + $0x71c] sm:$0xff]
    %v281 = vld [vmem:[#allocation5 + $0x724] sm:$0xff]
    %v282 = vld [vmem:[#allocation5 + $0x72c] sm:$0xf]
    %v283 = vld [vmem:[#allocation5 + $0x730] sm:$0xff]
    %v284 = vld [vmem:[#allocation5 + $0x738] sm:$0xff]
    %v285 = vld [vmem:[#allocation5 + $0x740] sm:$0xff]
    %v286 = vld [vmem:[#allocation5 + $0x748] sm:$0xff]
    %v287 = vld [vmem:[#allocation5 + $0x750] sm:$0xff]
    %v288 = vld [vmem:[#allocation5 + $0x758] sm:$0xff]
    %v289 = vld [vmem:[#allocation5 + $0x760] sm:$0xff]
    %v290 = vld [vmem:[#allocation5 + $0x768] sm:$0xff]
    %v291 = vld [vmem:[#allocation5 + $0x770] sm:$0xff]
    %v292 = vld [vmem:[#allocation5 + $0x778] sm:$0xff]
    %v293 = vld [vmem:[#allocation5 + $0x780] sm:$0xff]
    %v294 = vld [vmem:[#allocation5 + $0x788] sm:$0xf]
    %v295 = vld [vmem:[#allocation5 + $0x78c] sm:$0xff]
    %v296 = vld [vmem:[#allocation5 + $0x794] sm:$0xff]
    %v297 = vld [vmem:[#allocation5 + $0x79c] sm:$0xff]
    %v298 = vld [vmem:[#allocation5 + $0x7a4] sm:$0xff]
    %v299 = vld [vmem:[#allocation5 + $0x7ac] sm:$0xff]
    %v300 = vld [vmem:[#allocation5 + $0x7b4] sm:$0xff]
    %v301 = vld [vmem:[#allocation5 + $0x7bc] sm:$0xff]
    %v302 = vld [vmem:[#allocation5 + $0x7c4] sm:$0xff]
    %v303 = vld [vmem:[#allocation5 + $0x7cc] sm:$0xff]
    %v304 = vld [vmem:[#allocation5 + $0x7d4] sm:$0xff]
    %v305 = vld [vmem:[#allocation5 + $0x7dc] sm:$0xff]
    %v306 = vld [vmem:[#allocation5 + $0x7e4] sm:$0xf]
    %v307 = vld [vmem:[#allocation5 + $0x7e8] sm:$0xff]
    %v308 = vld [vmem:[#allocation5 + $0x7f0] sm:$0xff]
    %v309 = vld [vmem:[#allocation5 + $0x7f8] sm:$0xff]
    %v310 = vld [vmem:[#allocation5 + $0x800] sm:$0xff]
    %v311 = vld [vmem:[#allocation5 + $0x808] sm:$0xff]
    %v312 = vld [vmem:[#allocation5 + $0x810] sm:$0xff]
    %v313 = vld [vmem:[#allocation5 + $0x818] sm:$0xff]
    %v314 = vld [vmem:[#allocation5 + $0x820] sm:$0xff]
    %v315 = vld [vmem:[#allocation5 + $0x828] sm:$0xff]
    %v316 = vld [vmem:[#allocation5 + $0x830] sm:$0xff]
    %v317 = vld [vmem:[#allocation5 + $0x838] sm:$0xff]
    %v318 = vld [vmem:[#allocation5 + $0x840] sm:$0xf]
    %v319 = vld [vmem:[#allocation5 + $0x844] sm:$0xff]
    %v320 = vld [vmem:[#allocation5 + $0x84c] sm:$0xff]
    %v321 = vld [vmem:[#allocation5 + $0x854] sm:$0xff]
    %v322 = vld [vmem:[#allocation5 + $0x85c] sm:$0xff]
    %v323 = vld [vmem:[#allocation5 + $0x864] sm:$0xff]
    %v324 = vld [vmem:[#allocation5 + $0x86c] sm:$0xff]
    %v325 = vld [vmem:[#allocation5 + $0x874] sm:$0xff]
    %v326 = vld [vmem:[#allocation5 + $0x87c] sm:$0xff]
    %v327 = vld [vmem:[#allocation5 + $0x884] sm:$0xff]
    %v328 = vld [vmem:[#allocation5 + $0x88c] sm:$0xff]
    %v329 = vld [vmem:[#allocation5 + $0x894] sm:$0xff]
    %v330 = vld [vmem:[#allocation5 + $0x89c] sm:$0xf]
    %v331 = vld [vmem:[#allocation5 + $0x8a0] sm:$0xff]
    %v332 = vld [vmem:[#allocation5 + $0x8a8] sm:$0xff]
    %v333 = vld [vmem:[#allocation5 + $0x8b0] sm:$0xff]
    %v334 = vld [vmem:[#allocation5 + $0x8b8] sm:$0xff]
    %v335 = vld [vmem:[#allocation5 + $0x8c0] sm:$0xff]
    %v336 = vld [vmem:[#allocation5 + $0x8c8] sm:$0xff]
    %v337 = vld [vmem:[#allocation5 + $0x8d0] sm:$0xff]
    %v338 = vld [vmem:[#allocation5 + $0x8d8] sm:$0xff]
    %v339 = vld [vmem:[#allocation5 + $0x8e0] sm:$0xff]
    %v340 = vld [vmem:[#allocation5 + $0x8e8] sm:$0xff]
    %v341 = vld [vmem:[#allocation5 + $0x8f0] sm:$0xff]
    %v342 = vld [vmem:[#allocation5 + $0x8f8] sm:$0xf]
    %v343 = vld [vmem:[#allocation5 + $0x8fc] sm:$0xff]
    %v344 = vld [vmem:[#allocation5 + $0x904] sm:$0xff]
    %v345 = vld [vmem:[#allocation5 + $0x90c] sm:$0xff]
    %v346 = vld [vmem:[#allocation5 + $0x914] sm:$0xff]
    %v347 = vld [vmem:[#allocation5 + $0x91c] sm:$0xff]
    %v348 = vld [vmem:[#allocation5 + $0x924] sm:$0xff]
    %v349 = vld [vmem:[#allocation5 + $0x92c] sm:$0xff]
    %v350 = vld [vmem:[#allocation5 + $0x934] sm:$0xff]
    %v351 = vld [vmem:[#allocation5 + $0x93c] sm:$0xff]
    %v352 = vld [vmem:[#allocation5 + $0x944] sm:$0xff]
    %v353 = vld [vmem:[#allocation5 + $0x94c] sm:$0xff]
    %v354 = vld [vmem:[#allocation5 + $0x954] sm:$0xf]
    %v355 = vld [vmem:[#allocation5 + $0x958] sm:$0xff]
    %v356 = vld [vmem:[#allocation5 + $0x960] sm:$0xff]
    %v357 = vld [vmem:[#allocation5 + $0x968] sm:$0xff]
    %v358 = vld [vmem:[#allocation5 + $0x970] sm:$0xff]
    %v359 = vld [vmem:[#allocation5 + $0x978] sm:$0xff]
    %v360 = vld [vmem:[#allocation5 + $0x980] sm:$0xff]
    %v361 = vld [vmem:[#allocation5 + $0x988] sm:$0xff]
    %v362 = vld [vmem:[#allocation5 + $0x990] sm:$0xff]
    %v363 = vld [vmem:[#allocation5 + $0x998] sm:$0xff]
    %v364 = vld [vmem:[#allocation5 + $0x9a0] sm:$0xff]
    %v365 = vld [vmem:[#allocation5 + $0x9a8] sm:$0xff]
    %v366 = vld [vmem:[#allocation5 + $0x9b0] sm:$0xf]
    %v367 = vld [vmem:[#allocation5 + $0x9b4] sm:$0xff]
    %v368 = vld [vmem:[#allocation5 + $0x9bc] sm:$0xff]
    %v369 = vld [vmem:[#allocation5 + $0x9c4] sm:$0xff]
    %v370 = vld [vmem:[#allocation5 + $0x9cc] sm:$0xff]
    %v371 = vld [vmem:[#allocation5 + $0x9d4] sm:$0xff]
    %v372 = vld [vmem:[#allocation5 + $0x9dc] sm:$0xff]
    %v373 = vld [vmem:[#allocation5 + $0x9e4] sm:$0xff]
    %v374 = vld [vmem:[#allocation5 + $0x9ec] sm:$0xff]
    %v375 = vld [vmem:[#allocation5 + $0x9f4] sm:$0xff]
    %v376 = vld [vmem:[#allocation5 + $0x9fc] sm:$0xff]
    %v377 = vld [vmem:[#allocation5 + $0xa04] sm:$0xff]
    %v378 = vld [vmem:[#allocation5 + $0xa0c] sm:$0xf]
    %v379 = vld [vmem:[#allocation5 + $0xa10] sm:$0xff]
    %v380 = vld [vmem:[#allocation5 + $0xa18] sm:$0xff]
    %v381 = vld [vmem:[#allocation5 + $0xa20] sm:$0xff]
    %v382 = vld [vmem:[#allocation5 + $0xa28] sm:$0xff]
    %v383 = vld [vmem:[#allocation5 + $0xa30] sm:$0xff]
    %v384 = vld [vmem:[#allocation5 + $0xa38] sm:$0xff]
    %v385 = vld [vmem:[#allocation5 + $0xa40] sm:$0xff]
    %v386 = vld [vmem:[#allocation5 + $0xa48] sm:$0xff]
    %v387 = vld [vmem:[#allocation5 + $0xa50] sm:$0xff]
    %v388 = vld [vmem:[#allocation5 + $0xa58] sm:$0xff]
    %v389 = vld [vmem:[#allocation5 + $0xa60] sm:$0xff]
    %v390 = vld [vmem:[#allocation5 + $0xa68] sm:$0xf]
    %v391 = vld [vmem:[#allocation5 + $0xa6c] sm:$0xff]
    %v392 = vld [vmem:[#allocation5 + $0xa74] sm:$0xff]
    %v393 = vld [vmem:[#allocation5 + $0xa7c] sm:$0xff]
    %v394 = vld [vmem:[#allocation5 + $0xa84] sm:$0xff]
    %v395 = vld [vmem:[#allocation5 + $0xa8c] sm:$0xff]
    %v396 = vld [vmem:[#allocation5 + $0xa94] sm:$0xff]
    %v397 = vld [vmem:[#allocation5 + $0xa9c] sm:$0xff]
    %v398 = vld [vmem:[#allocation5 + $0xaa4] sm:$0xff]
    %v399 = vld [vmem:[#allocation5 + $0xaac] sm:$0xff]
    %v400 = vld [vmem:[#allocation5 + $0xab4] sm:$0xff]
    %v401 = vld [vmem:[#allocation5 + $0xabc] sm:$0xff]
    %v402 = vld [vmem:[#allocation5 + $0xac4] sm:$0xf]
    %v403 = vld [vmem:[#allocation5 + $0xac8] sm:$0xff]
    %v404 = vld [vmem:[#allocation5 + $0xad0] sm:$0xff]
    %v405 = vld [vmem:[#allocation5 + $0xad8] sm:$0xff]
    %v406 = vld [vmem:[#allocation5 + $0xae0] sm:$0xff]
    %v407 = vld [vmem:[#allocation5 + $0xae8] sm:$0xff]
    %v408 = vld [vmem:[#allocation5 + $0xaf0] sm:$0xff]
    %v409 = vld [vmem:[#allocation5 + $0xaf8] sm:$0xff]
    %v410 = vld [vmem:[#allocation5 + $0xb00] sm:$0xff]
    %v411 = vld [vmem:[#allocation5 + $0xb08] sm:$0xff]
    %v412 = vld [vmem:[#allocation5 + $0xb10] sm:$0xff]
    %v413 = vld [vmem:[#allocation5 + $0xb18] sm:$0xff]
    %v414 = vld [vmem:[#allocation5 + $0xb20] sm:$0xf]
    %v415 = vld [vmem:[#allocation5 + $0xb24] sm:$0xff]
    %v416 = vld [vmem:[#allocation5 + $0xb2c] sm:$0xff]
    %v417 = vld [vmem:[#allocation5 + $0xb34] sm:$0xff]
    %v418 = vld [vmem:[#allocation5 + $0xb3c] sm:$0xff]
    %v419 = vld [vmem:[#allocation5 + $0xb44] sm:$0xff]
    %v420 = vld [vmem:[#allocation5 + $0xb4c] sm:$0xff]
    %v421 = vld [vmem:[#allocation5 + $0xb54] sm:$0xff]
    %v422 = vld [vmem:[#allocation5 + $0xb5c] sm:$0xff]
    %v423 = vld [vmem:[#allocation5 + $0xb64] sm:$0xff]
    %v424 = vld [vmem:[#allocation5 + $0xb6c] sm:$0xff]
    %v425 = vld [vmem:[#allocation5 + $0xb74] sm:$0xff]
    %v426 = vld [vmem:[#allocation5 + $0xb7c] sm:$0xf]
    %v811 = vunpack.c.l.b16 %v43
    %v812 = vunpack.c.h.b16 %v43
    %v813 = vunpack.c.l.b16 %v44
    %v814 = vunpack.c.h.b16 %v44
    %v815 = vunpack.c.l.b16 %v45
    %v816 = vunpack.c.h.b16 %v45
    %v817 = vunpack.c.l.b16 %v46
    %v818 = vunpack.c.h.b16 %v46
    %v819 = vunpack.c.l.b16 %v47
    %v820 = vunpack.c.h.b16 %v47
    %v821 = vunpack.c.l.b16 %v48
    %v822 = vunpack.c.h.b16 %v48
    %v823 = vunpack.c.l.b16 %v49
    %v824 = vunpack.c.h.b16 %v49
    %v825 = vunpack.c.l.b16 %v50
    %v826 = vunpack.c.h.b16 %v50
    %v827 = vunpack.c.l.b16 %v51
    %v828 = vunpack.c.h.b16 %v51
    %v829 = vunpack.c.l.b16 %v52
    %v830 = vunpack.c.h.b16 %v52
    %v831 = vunpack.c.l.b16 %v53
    %v832 = vunpack.c.h.b16 %v53
    %v833 = vunpack.c.l.b16 %v54
    %v834 = vunpack.c.l.b16 %v55
    %v835 = vunpack.c.h.b16 %v55
    %v836 = vunpack.c.l.b16 %v56
    %v837 = vunpack.c.h.b16 %v56
    %v838 = vunpack.c.l.b16 %v57
    %v839 = vunpack.c.h.b16 %v57
    %v840 = vunpack.c.l.b16 %v58
    %v841 = vunpack.c.h.b16 %v58
    %v842 = vunpack.c.l.b16 %v59
    %v843 = vunpack.c.h.b16 %v59
    %v844 = vunpack.c.l.b16 %v60
    %v845 = vunpack.c.h.b16 %v60
    %v846 = vunpack.c.l.b16 %v61
    %v847 = vunpack.c.h.b16 %v61
    %v848 = vunpack.c.l.b16 %v62
    %v849 = vunpack.c.h.b16 %v62
    %v850 = vunpack.c.l.b16 %v63
    %v851 = vunpack.c.h.b16 %v63
    %v852 = vunpack.c.l.b16 %v64
    %v853 = vunpack.c.h.b16 %v64
    %v854 = vunpack.c.l.b16 %v65
    %v855 = vunpack.c.h.b16 %v65
    %v856 = vunpack.c.l.b16 %v66
    %v857 = vunpack.c.l.b16 %v67
    %v858 = vunpack.c.h.b16 %v67
    %v859 = vunpack.c.l.b16 %v68
    %v860 = vunpack.c.h.b16 %v68
    %v861 = vunpack.c.l.b16 %v69
    %v862 = vunpack.c.h.b16 %v69
    %v863 = vunpack.c.l.b16 %v70
    %v864 = vunpack.c.h.b16 %v70
    %v865 = vunpack.c.l.b16 %v71
    %v866 = vunpack.c.h.b16 %v71
    %v867 = vunpack.c.l.b16 %v72
    %v868 = vunpack.c.h.b16 %v72
    %v869 = vunpack.c.l.b16 %v73
    %v870 = vunpack.c.h.b16 %v73
    %v871 = vunpack.c.l.b16 %v74
    %v872 = vunpack.c.h.b16 %v74
    %v873 = vunpack.c.l.b16 %v75
    %v874 = vunpack.c.h.b16 %v75
    %v875 = vunpack.c.l.b16 %v76
    %v876 = vunpack.c.h.b16 %v76
    %v877 = vunpack.c.l.b16 %v77
    %v878 = vunpack.c.h.b16 %v77
    %v879 = vunpack.c.l.b16 %v78
    %v880 = vunpack.c.l.b16 %v79
    %v881 = vunpack.c.h.b16 %v79
    %v882 = vunpack.c.l.b16 %v80
    %v883 = vunpack.c.h.b16 %v80
    %v884 = vunpack.c.l.b16 %v81
    %v885 = vunpack.c.h.b16 %v81
    %v886 = vunpack.c.l.b16 %v82
    %v887 = vunpack.c.h.b16 %v82
    %v888 = vunpack.c.l.b16 %v83
    %v889 = vunpack.c.h.b16 %v83
    %v890 = vunpack.c.l.b16 %v84
    %v891 = vunpack.c.h.b16 %v84
    %v892 = vunpack.c.l.b16 %v85
    %v893 = vunpack.c.h.b16 %v85
    %v894 = vunpack.c.l.b16 %v86
    %v895 = vunpack.c.h.b16 %v86
    %v896 = vunpack.c.l.b16 %v87
    %v897 = vunpack.c.h.b16 %v87
    %v898 = vunpack.c.l.b16 %v88
    %v899 = vunpack.c.h.b16 %v88
    %v900 = vunpack.c.l.b16 %v89
    %v901 = vunpack.c.h.b16 %v89
    %v902 = vunpack.c.l.b16 %v90
    %v903 = vunpack.c.l.b16 %v91
    %v904 = vunpack.c.h.b16 %v91
    %v905 = vunpack.c.l.b16 %v92
    %v906 = vunpack.c.h.b16 %v92
    %v907 = vunpack.c.l.b16 %v93
    %v908 = vunpack.c.h.b16 %v93
    %v909 = vunpack.c.l.b16 %v94
    %v910 = vunpack.c.h.b16 %v94
    %v911 = vunpack.c.l.b16 %v95
    %v912 = vunpack.c.h.b16 %v95
    %v913 = vunpack.c.l.b16 %v96
    %v914 = vunpack.c.h.b16 %v96
    %v915 = vunpack.c.l.b16 %v97
    %v916 = vunpack.c.h.b16 %v97
    %v917 = vunpack.c.l.b16 %v98
    %v918 = vunpack.c.h.b16 %v98
    %v919 = vunpack.c.l.b16 %v99
    %v920 = vunpack.c.h.b16 %v99
    %v921 = vunpack.c.l.b16 %v100
    %v922 = vunpack.c.h.b16 %v100
    %v923 = vunpack.c.l.b16 %v101
    %v924 = vunpack.c.h.b16 %v101
    %v925 = vunpack.c.l.b16 %v102
    %v926 = vunpack.c.l.b16 %v103
    %v927 = vunpack.c.h.b16 %v103
    %v928 = vunpack.c.l.b16 %v104
    %v929 = vunpack.c.h.b16 %v104
    %v930 = vunpack.c.l.b16 %v105
    %v931 = vunpack.c.h.b16 %v105
    %v932 = vunpack.c.l.b16 %v106
    %v933 = vunpack.c.h.b16 %v106
    %v934 = vunpack.c.l.b16 %v107
    %v935 = vunpack.c.h.b16 %v107
    %v936 = vunpack.c.l.b16 %v108
    %v937 = vunpack.c.h.b16 %v108
    %v938 = vunpack.c.l.b16 %v109
    %v939 = vunpack.c.h.b16 %v109
    %v940 = vunpack.c.l.b16 %v110
    %v941 = vunpack.c.h.b16 %v110
    %v942 = vunpack.c.l.b16 %v111
    %v943 = vunpack.c.h.b16 %v111
    %v944 = vunpack.c.l.b16 %v112
    %v945 = vunpack.c.h.b16 %v112
    %v946 = vunpack.c.l.b16 %v113
    %v947 = vunpack.c.h.b16 %v113
    %v948 = vunpack.c.l.b16 %v114
    %v949 = vunpack.c.l.b16 %v115
    %v950 = vunpack.c.h.b16 %v115
    %v951 = vunpack.c.l.b16 %v116
    %v952 = vunpack.c.h.b16 %v116
    %v953 = vunpack.c.l.b16 %v117
    %v954 = vunpack.c.h.b16 %v117
    %v955 = vunpack.c.l.b16 %v118
    %v956 = vunpack.c.h.b16 %v118
    %v957 = vunpack.c.l.b16 %v119
    %v958 = vunpack.c.h.b16 %v119
    %v959 = vunpack.c.l.b16 %v120
    %v960 = vunpack.c.h.b16 %v120
    %v961 = vunpack.c.l.b16 %v121
    %v962 = vunpack.c.h.b16 %v121
    %v963 = vunpack.c.l.b16 %v122
    %v964 = vunpack.c.h.b16 %v122
    %v965 = vunpack.c.l.b16 %v123
    %v966 = vunpack.c.h.b16 %v123
    %v967 = vunpack.c.l.b16 %v124
    %v968 = vunpack.c.h.b16 %v124
    %v969 = vunpack.c.l.b16 %v125
    %v970 = vunpack.c.h.b16 %v125
    %v971 = vunpack.c.l.b16 %v126
    %v972 = vunpack.c.l.b16 %v127
    %v973 = vunpack.c.h.b16 %v127
    %v974 = vunpack.c.l.b16 %v128
    %v975 = vunpack.c.h.b16 %v128
    %v976 = vunpack.c.l.b16 %v129
    %v977 = vunpack.c.h.b16 %v129
    %v978 = vunpack.c.l.b16 %v130
    %v979 = vunpack.c.h.b16 %v130
    %v980 = vunpack.c.l.b16 %v131
    %v981 = vunpack.c.h.b16 %v131
    %v982 = vunpack.c.l.b16 %v132
    %v983 = vunpack.c.h.b16 %v132
    %v984 = vunpack.c.l.b16 %v133
    %v985 = vunpack.c.h.b16 %v133
    %v986 = vunpack.c.l.b16 %v134
    %v987 = vunpack.c.h.b16 %v134
    %v988 = vunpack.c.l.b16 %v135
    %v989 = vunpack.c.h.b16 %v135
    %v990 = vunpack.c.l.b16 %v136
    %v991 = vunpack.c.h.b16 %v136
    %v992 = vunpack.c.l.b16 %v137
    %v993 = vunpack.c.h.b16 %v137
    %v994 = vunpack.c.l.b16 %v138
    %v995 = vunpack.c.l.b16 %v139
    %v996 = vunpack.c.h.b16 %v139
    %v997 = vunpack.c.l.b16 %v140
    %v998 = vunpack.c.h.b16 %v140
    %v999 = vunpack.c.l.b16 %v141
    %v1000 = vunpack.c.h.b16 %v141
    %v1001 = vunpack.c.l.b16 %v142
    %v1002 = vunpack.c.h.b16 %v142
    %v1003 = vunpack.c.l.b16 %v143
    %v1004 = vunpack.c.h.b16 %v143
    %v1005 = vunpack.c.l.b16 %v144
    %v1006 = vunpack.c.h.b16 %v144
    %v1007 = vunpack.c.l.b16 %v145
    %v1008 = vunpack.c.h.b16 %v145
    %v1009 = vunpack.c.l.b16 %v146
    %v1010 = vunpack.c.h.b16 %v146
    %v1011 = vunpack.c.l.b16 %v147
    %v1012 = vunpack.c.h.b16 %v147
    %v1013 = vunpack.c.l.b16 %v148
    %v1014 = vunpack.c.h.b16 %v148
    %v1015 = vunpack.c.l.b16 %v149
    %v1016 = vunpack.c.h.b16 %v149
    %v1017 = vunpack.c.l.b16 %v150
    %v1018 = vunpack.c.l.b16 %v151
    %v1019 = vunpack.c.h.b16 %v151
    %v1020 = vunpack.c.l.b16 %v152
    %v1021 = vunpack.c.h.b16 %v152
    %v1022 = vunpack.c.l.b16 %v153
    %v1023 = vunpack.c.h.b16 %v153
    %v1024 = vunpack.c.l.b16 %v154
    %v1025 = vunpack.c.h.b16 %v154
    %v1026 = vunpack.c.l.b16 %v155
    %v1027 = vunpack.c.h.b16 %v155
    %v1028 = vunpack.c.l.b16 %v156
    %v1029 = vunpack.c.h.b16 %v156
    %v1030 = vunpack.c.l.b16 %v157
    %v1031 = vunpack.c.h.b16 %v157
    %v1032 = vunpack.c.l.b16 %v158
    %v1033 = vunpack.c.h.b16 %v158
    %v1034 = vunpack.c.l.b16 %v159
    %v1035 = vunpack.c.h.b16 %v159
    %v1036 = vunpack.c.l.b16 %v160
    %v1037 = vunpack.c.h.b16 %v160
    %v1038 = vunpack.c.l.b16 %v161
    %v1039 = vunpack.c.h.b16 %v161
    %v1040 = vunpack.c.l.b16 %v162
    %v1041 = vunpack.c.l.b16 %v163
    %v1042 = vunpack.c.h.b16 %v163
    %v1043 = vunpack.c.l.b16 %v164
    %v1044 = vunpack.c.h.b16 %v164
    %v1045 = vunpack.c.l.b16 %v165
    %v1046 = vunpack.c.h.b16 %v165
    %v1047 = vunpack.c.l.b16 %v166
    %v1048 = vunpack.c.h.b16 %v166
    %v1049 = vunpack.c.l.b16 %v167
    %v1050 = vunpack.c.h.b16 %v167
    %v1051 = vunpack.c.l.b16 %v168
    %v1052 = vunpack.c.h.b16 %v168
    %v1053 = vunpack.c.l.b16 %v169
    %v1054 = vunpack.c.h.b16 %v169
    %v1055 = vunpack.c.l.b16 %v170
    %v1056 = vunpack.c.h.b16 %v170
    %v1057 = vunpack.c.l.b16 %v171
    %v1058 = vunpack.c.h.b16 %v171
    %v1059 = vunpack.c.l.b16 %v172
    %v1060 = vunpack.c.h.b16 %v172
    %v1061 = vunpack.c.l.b16 %v173
    %v1062 = vunpack.c.h.b16 %v173
    %v1063 = vunpack.c.l.b16 %v174
    %v1064 = vunpack.c.l.b16 %v175
    %v1065 = vunpack.c.h.b16 %v175
    %v1066 = vunpack.c.l.b16 %v176
    %v1067 = vunpack.c.h.b16 %v176
    %v1068 = vunpack.c.l.b16 %v177
    %v1069 = vunpack.c.h.b16 %v177
    %v1070 = vunpack.c.l.b16 %v178
    %v1071 = vunpack.c.h.b16 %v178
    %v1072 = vunpack.c.l.b16 %v179
    %v1073 = vunpack.c.h.b16 %v179
    %v1074 = vunpack.c.l.b16 %v180
    %v1075 = vunpack.c.h.b16 %v180
    %v1076 = vunpack.c.l.b16 %v181
    %v1077 = vunpack.c.h.b16 %v181
    %v1078 = vunpack.c.l.b16 %v182
    %v1079 = vunpack.c.h.b16 %v182
    %v1080 = vunpack.c.l.b16 %v183
    %v1081 = vunpack.c.h.b16 %v183
    %v1082 = vunpack.c.l.b16 %v184
    %v1083 = vunpack.c.h.b16 %v184
    %v1084 = vunpack.c.l.b16 %v185
    %v1085 = vunpack.c.h.b16 %v185
    %v1086 = vunpack.c.l.b16 %v186
    %v1087 = vunpack.c.l.b16 %v187
    %v1088 = vunpack.c.h.b16 %v187
    %v1089 = vunpack.c.l.b16 %v188
    %v1090 = vunpack.c.h.b16 %v188
    %v1091 = vunpack.c.l.b16 %v189
    %v1092 = vunpack.c.h.b16 %v189
    %v1093 = vunpack.c.l.b16 %v190
    %v1094 = vunpack.c.h.b16 %v190
    %v1095 = vunpack.c.l.b16 %v191
    %v1096 = vunpack.c.h.b16 %v191
    %v1097 = vunpack.c.l.b16 %v192
    %v1098 = vunpack.c.h.b16 %v192
    %v1099 = vunpack.c.l.b16 %v193
    %v1100 = vunpack.c.h.b16 %v193
    %v1101 = vunpack.c.l.b16 %v194
    %v1102 = vunpack.c.h.b16 %v194
    %v1103 = vunpack.c.l.b16 %v195
    %v1104 = vunpack.c.h.b16 %v195
    %v1105 = vunpack.c.l.b16 %v196
    %v1106 = vunpack.c.h.b16 %v196
    %v1107 = vunpack.c.l.b16 %v197
    %v1108 = vunpack.c.h.b16 %v197
    %v1109 = vunpack.c.l.b16 %v198
    %v1110 = vunpack.c.l.b16 %v199
    %v1111 = vunpack.c.h.b16 %v199
    %v1112 = vunpack.c.l.b16 %v200
    %v1113 = vunpack.c.h.b16 %v200
    %v1114 = vunpack.c.l.b16 %v201
    %v1115 = vunpack.c.h.b16 %v201
    %v1116 = vunpack.c.l.b16 %v202
    %v1117 = vunpack.c.h.b16 %v202
    %v1118 = vunpack.c.l.b16 %v203
    %v1119 = vunpack.c.h.b16 %v203
    %v1120 = vunpack.c.l.b16 %v204
    %v1121 = vunpack.c.h.b16 %v204
    %v1122 = vunpack.c.l.b16 %v205
    %v1123 = vunpack.c.h.b16 %v205
    %v1124 = vunpack.c.l.b16 %v206
    %v1125 = vunpack.c.h.b16 %v206
    %v1126 = vunpack.c.l.b16 %v207
    %v1127 = vunpack.c.h.b16 %v207
    %v1128 = vunpack.c.l.b16 %v208
    %v1129 = vunpack.c.h.b16 %v208
    %v1130 = vunpack.c.l.b16 %v209
    %v1131 = vunpack.c.h.b16 %v209
    %v1132 = vunpack.c.l.b16 %v210
    %v1133 = vunpack.c.l.b16 %v211
    %v1134 = vunpack.c.h.b16 %v211
    %v1135 = vunpack.c.l.b16 %v212
    %v1136 = vunpack.c.h.b16 %v212
    %v1137 = vunpack.c.l.b16 %v213
    %v1138 = vunpack.c.h.b16 %v213
    %v1139 = vunpack.c.l.b16 %v214
    %v1140 = vunpack.c.h.b16 %v214
    %v1141 = vunpack.c.l.b16 %v215
    %v1142 = vunpack.c.h.b16 %v215
    %v1143 = vunpack.c.l.b16 %v216
    %v1144 = vunpack.c.h.b16 %v216
    %v1145 = vunpack.c.l.b16 %v217
    %v1146 = vunpack.c.h.b16 %v217
    %v1147 = vunpack.c.l.b16 %v218
    %v1148 = vunpack.c.h.b16 %v218
    %v1149 = vunpack.c.l.b16 %v219
    %v1150 = vunpack.c.h.b16 %v219
    %v1151 = vunpack.c.l.b16 %v220
    %v1152 = vunpack.c.h.b16 %v220
    %v1153 = vunpack.c.l.b16 %v221
    %v1154 = vunpack.c.h.b16 %v221
    %v1155 = vunpack.c.l.b16 %v222
    %v1156 = vunpack.c.l.b16 %v223
    %v1157 = vunpack.c.h.b16 %v223
    %v1158 = vunpack.c.l.b16 %v224
    %v1159 = vunpack.c.h.b16 %v224
    %v1160 = vunpack.c.l.b16 %v225
    %v1161 = vunpack.c.h.b16 %v225
    %v1162 = vunpack.c.l.b16 %v226
    %v1163 = vunpack.c.h.b16 %v226
    %v1164 = vunpack.c.l.b16 %v227
    %v1165 = vunpack.c.h.b16 %v227
    %v1166 = vunpack.c.l.b16 %v228
    %v1167 = vunpack.c.h.b16 %v228
    %v1168 = vunpack.c.l.b16 %v229
    %v1169 = vunpack.c.h.b16 %v229
    %v1170 = vunpack.c.l.b16 %v230
    %v1171 = vunpack.c.h.b16 %v230
    %v1172 = vunpack.c.l.b16 %v231
    %v1173 = vunpack.c.h.b16 %v231
    %v1174 = vunpack.c.l.b16 %v232
    %v1175 = vunpack.c.h.b16 %v232
    %v1176 = vunpack.c.l.b16 %v233
    %v1177 = vunpack.c.h.b16 %v233
    %v1178 = vunpack.c.l.b16 %v234
    %v1179 = vunpack.c.l.b16 %v235
    %v1180 = vunpack.c.h.b16 %v235
    %v1181 = vunpack.c.l.b16 %v236
    %v1182 = vunpack.c.h.b16 %v236
    %v1183 = vunpack.c.l.b16 %v237
    %v1184 = vunpack.c.h.b16 %v237
    %v1185 = vunpack.c.l.b16 %v238
    %v1186 = vunpack.c.h.b16 %v238
    %v1187 = vunpack.c.l.b16 %v239
    %v1188 = vunpack.c.h.b16 %v239
    %v1189 = vunpack.c.l.b16 %v240
    %v1190 = vunpack.c.h.b16 %v240
    %v1191 = vunpack.c.l.b16 %v241
    %v1192 = vunpack.c.h.b16 %v241
    %v1193 = vunpack.c.l.b16 %v242
    %v1194 = vunpack.c.h.b16 %v242
    %v1195 = vunpack.c.l.b16 %v243
    %v1196 = vunpack.c.h.b16 %v243
    %v1197 = vunpack.c.l.b16 %v244
    %v1198 = vunpack.c.h.b16 %v244
    %v1199 = vunpack.c.l.b16 %v245
    %v1200 = vunpack.c.h.b16 %v245
    %v1201 = vunpack.c.l.b16 %v246
    %v1202 = vunpack.c.l.b16 %v247
    %v1203 = vunpack.c.h.b16 %v247
    %v1204 = vunpack.c.l.b16 %v248
    %v1205 = vunpack.c.h.b16 %v248
    %v1206 = vunpack.c.l.b16 %v249
    %v1207 = vunpack.c.h.b16 %v249
    %v1208 = vunpack.c.l.b16 %v250
    %v1209 = vunpack.c.h.b16 %v250
    %v1210 = vunpack.c.l.b16 %v251
    %v1211 = vunpack.c.h.b16 %v251
    %v1212 = vunpack.c.l.b16 %v252
    %v1213 = vunpack.c.h.b16 %v252
    %v1214 = vunpack.c.l.b16 %v253
    %v1215 = vunpack.c.h.b16 %v253
    %v1216 = vunpack.c.l.b16 %v254
    %v1217 = vunpack.c.h.b16 %v254
    %v1218 = vunpack.c.l.b16 %v255
    %v1219 = vunpack.c.h.b16 %v255
    %v1220 = vunpack.c.l.b16 %v256
    %v1221 = vunpack.c.h.b16 %v256
    %v1222 = vunpack.c.l.b16 %v257
    %v1223 = vunpack.c.h.b16 %v257
    %v1224 = vunpack.c.l.b16 %v258
    %v1225 = vunpack.c.l.b16 %v259
    %v1226 = vunpack.c.h.b16 %v259
    %v1227 = vunpack.c.l.b16 %v260
    %v1228 = vunpack.c.h.b16 %v260
    %v1229 = vunpack.c.l.b16 %v261
    %v1230 = vunpack.c.h.b16 %v261
    %v1231 = vunpack.c.l.b16 %v262
    %v1232 = vunpack.c.h.b16 %v262
    %v1233 = vunpack.c.l.b16 %v263
    %v1234 = vunpack.c.h.b16 %v263
    %v1235 = vunpack.c.l.b16 %v264
    %v1236 = vunpack.c.h.b16 %v264
    %v1237 = vunpack.c.l.b16 %v265
    %v1238 = vunpack.c.h.b16 %v265
    %v1239 = vunpack.c.l.b16 %v266
    %v1240 = vunpack.c.h.b16 %v266
    %v1241 = vunpack.c.l.b16 %v267
    %v1242 = vunpack.c.h.b16 %v267
    %v1243 = vunpack.c.l.b16 %v268
    %v1244 = vunpack.c.h.b16 %v268
    %v1245 = vunpack.c.l.b16 %v269
    %v1246 = vunpack.c.h.b16 %v269
    %v1247 = vunpack.c.l.b16 %v270
    %v1248 = vunpack.c.l.b16 %v271
    %v1249 = vunpack.c.h.b16 %v271
    %v1250 = vunpack.c.l.b16 %v272
    %v1251 = vunpack.c.h.b16 %v272
    %v1252 = vunpack.c.l.b16 %v273
    %v1253 = vunpack.c.h.b16 %v273
    %v1254 = vunpack.c.l.b16 %v274
    %v1255 = vunpack.c.h.b16 %v274
    %v1256 = vunpack.c.l.b16 %v275
    %v1257 = vunpack.c.h.b16 %v275
    %v1258 = vunpack.c.l.b16 %v276
    %v1259 = vunpack.c.h.b16 %v276
    %v1260 = vunpack.c.l.b16 %v277
    %v1261 = vunpack.c.h.b16 %v277
    %v1262 = vunpack.c.l.b16 %v278
    %v1263 = vunpack.c.h.b16 %v278
    %v1264 = vunpack.c.l.b16 %v279
    %v1265 = vunpack.c.h.b16 %v279
    %v1266 = vunpack.c.l.b16 %v280
    %v1267 = vunpack.c.h.b16 %v280
    %v1268 = vunpack.c.l.b16 %v281
    %v1269 = vunpack.c.h.b16 %v281
    %v1270 = vunpack.c.l.b16 %v282
    %v1271 = vunpack.c.l.b16 %v283
    %v1272 = vunpack.c.h.b16 %v283
    %v1273 = vunpack.c.l.b16 %v284
    %v1274 = vunpack.c.h.b16 %v284
    %v1275 = vunpack.c.l.b16 %v285
    %v1276 = vunpack.c.h.b16 %v285
    %v1277 = vunpack.c.l.b16 %v286
    %v1278 = vunpack.c.h.b16 %v286
    %v1279 = vunpack.c.l.b16 %v287
    %v1280 = vunpack.c.h.b16 %v287
    %v1281 = vunpack.c.l.b16 %v288
    %v1282 = vunpack.c.h.b16 %v288
    %v1283 = vunpack.c.l.b16 %v289
    %v1284 = vunpack.c.h.b16 %v289
    %v1285 = vunpack.c.l.b16 %v290
    %v1286 = vunpack.c.h.b16 %v290
    %v1287 = vunpack.c.l.b16 %v291
    %v1288 = vunpack.c.h.b16 %v291
    %v1289 = vunpack.c.l.b16 %v292
    %v1290 = vunpack.c.h.b16 %v292
    %v1291 = vunpack.c.l.b16 %v293
    %v1292 = vunpack.c.h.b16 %v293
    %v1293 = vunpack.c.l.b16 %v294
    %v1294 = vunpack.c.l.b16 %v295
    %v1295 = vunpack.c.h.b16 %v295
    %v1296 = vunpack.c.l.b16 %v296
    %v1297 = vunpack.c.h.b16 %v296
    %v1298 = vunpack.c.l.b16 %v297
    %v1299 = vunpack.c.h.b16 %v297
    %v1300 = vunpack.c.l.b16 %v298
    %v1301 = vunpack.c.h.b16 %v298
    %v1302 = vunpack.c.l.b16 %v299
    %v1303 = vunpack.c.h.b16 %v299
    %v1304 = vunpack.c.l.b16 %v300
    %v1305 = vunpack.c.h.b16 %v300
    %v1306 = vunpack.c.l.b16 %v301
    %v1307 = vunpack.c.h.b16 %v301
    %v1308 = vunpack.c.l.b16 %v302
    %v1309 = vunpack.c.h.b16 %v302
    %v1310 = vunpack.c.l.b16 %v303
    %v1311 = vunpack.c.h.b16 %v303
    %v1312 = vunpack.c.l.b16 %v304
    %v1313 = vunpack.c.h.b16 %v304
    %v1314 = vunpack.c.l.b16 %v305
    %v1315 = vunpack.c.h.b16 %v305
    %v1316 = vunpack.c.l.b16 %v306
    %v1317 = vunpack.c.l.b16 %v307
    %v1318 = vunpack.c.h.b16 %v307
    %v1319 = vunpack.c.l.b16 %v308
    %v1320 = vunpack.c.h.b16 %v308
    %v1321 = vunpack.c.l.b16 %v309
    %v1322 = vunpack.c.h.b16 %v309
    %v1323 = vunpack.c.l.b16 %v310
    %v1324 = vunpack.c.h.b16 %v310
    %v1325 = vunpack.c.l.b16 %v311
    %v1326 = vunpack.c.h.b16 %v311
    %v1327 = vunpack.c.l.b16 %v312
    %v1328 = vunpack.c.h.b16 %v312
    %v1329 = vunpack.c.l.b16 %v313
    %v1330 = vunpack.c.h.b16 %v313
    %v1331 = vunpack.c.l.b16 %v314
    %v1332 = vunpack.c.h.b16 %v314
    %v1333 = vunpack.c.l.b16 %v315
    %v1334 = vunpack.c.h.b16 %v315
    %v1335 = vunpack.c.l.b16 %v316
    %v1336 = vunpack.c.h.b16 %v316
    %v1337 = vunpack.c.l.b16 %v317
    %v1338 = vunpack.c.h.b16 %v317
    %v1339 = vunpack.c.l.b16 %v318
    %v1340 = vunpack.c.l.b16 %v319
    %v1341 = vunpack.c.h.b16 %v319
    %v1342 = vunpack.c.l.b16 %v320
    %v1343 = vunpack.c.h.b16 %v320
    %v1344 = vunpack.c.l.b16 %v321
    %v1345 = vunpack.c.h.b16 %v321
    %v1346 = vunpack.c.l.b16 %v322
    %v1347 = vunpack.c.h.b16 %v322
    %v1348 = vunpack.c.l.b16 %v323
    %v1349 = vunpack.c.h.b16 %v323
    %v1350 = vunpack.c.l.b16 %v324
    %v1351 = vunpack.c.h.b16 %v324
    %v1352 = vunpack.c.l.b16 %v325
    %v1353 = vunpack.c.h.b16 %v325
    %v1354 = vunpack.c.l.b16 %v326
    %v1355 = vunpack.c.h.b16 %v326
    %v1356 = vunpack.c.l.b16 %v327
    %v1357 = vunpack.c.h.b16 %v327
    %v1358 = vunpack.c.l.b16 %v328
    %v1359 = vunpack.c.h.b16 %v328
    %v1360 = vunpack.c.l.b16 %v329
    %v1361 = vunpack.c.h.b16 %v329
    %v1362 = vunpack.c.l.b16 %v330
    %v1363 = vunpack.c.l.b16 %v331
    %v1364 = vunpack.c.h.b16 %v331
    %v1365 = vunpack.c.l.b16 %v332
    %v1366 = vunpack.c.h.b16 %v332
    %v1367 = vunpack.c.l.b16 %v333
    %v1368 = vunpack.c.h.b16 %v333
    %v1369 = vunpack.c.l.b16 %v334
    %v1370 = vunpack.c.h.b16 %v334
    %v1371 = vunpack.c.l.b16 %v335
    %v1372 = vunpack.c.h.b16 %v335
    %v1373 = vunpack.c.l.b16 %v336
    %v1374 = vunpack.c.h.b16 %v336
    %v1375 = vunpack.c.l.b16 %v337
    %v1376 = vunpack.c.h.b16 %v337
    %v1377 = vunpack.c.l.b16 %v338
    %v1378 = vunpack.c.h.b16 %v338
    %v1379 = vunpack.c.l.b16 %v339
    %v1380 = vunpack.c.h.b16 %v339
    %v1381 = vunpack.c.l.b16 %v340
    %v1382 = vunpack.c.h.b16 %v340
    %v1383 = vunpack.c.l.b16 %v341
    %v1384 = vunpack.c.h.b16 %v341
    %v1385 = vunpack.c.l.b16 %v342
    %v1386 = vunpack.c.l.b16 %v343
    %v1387 = vunpack.c.h.b16 %v343
    %v1388 = vunpack.c.l.b16 %v344
    %v1389 = vunpack.c.h.b16 %v344
    %v1390 = vunpack.c.l.b16 %v345
    %v1391 = vunpack.c.h.b16 %v345
    %v1392 = vunpack.c.l.b16 %v346
    %v1393 = vunpack.c.h.b16 %v346
    %v1394 = vunpack.c.l.b16 %v347
    %v1395 = vunpack.c.h.b16 %v347
    %v1396 = vunpack.c.l.b16 %v348
    %v1397 = vunpack.c.h.b16 %v348
    %v1398 = vunpack.c.l.b16 %v349
    %v1399 = vunpack.c.h.b16 %v349
    %v1400 = vunpack.c.l.b16 %v350
    %v1401 = vunpack.c.h.b16 %v350
    %v1402 = vunpack.c.l.b16 %v351
    %v1403 = vunpack.c.h.b16 %v351
    %v1404 = vunpack.c.l.b16 %v352
    %v1405 = vunpack.c.h.b16 %v352
    %v1406 = vunpack.c.l.b16 %v353
    %v1407 = vunpack.c.h.b16 %v353
    %v1408 = vunpack.c.l.b16 %v354
    %v1409 = vunpack.c.l.b16 %v355
    %v1410 = vunpack.c.h.b16 %v355
    %v1411 = vunpack.c.l.b16 %v356
    %v1412 = vunpack.c.h.b16 %v356
    %v1413 = vunpack.c.l.b16 %v357
    %v1414 = vunpack.c.h.b16 %v357
    %v1415 = vunpack.c.l.b16 %v358
    %v1416 = vunpack.c.h.b16 %v358
    %v1417 = vunpack.c.l.b16 %v359
    %v1418 = vunpack.c.h.b16 %v359
    %v1419 = vunpack.c.l.b16 %v360
    %v1420 = vunpack.c.h.b16 %v360
    %v1421 = vunpack.c.l.b16 %v361
    %v1422 = vunpack.c.h.b16 %v361
    %v1423 = vunpack.c.l.b16 %v362
    %v1424 = vunpack.c.h.b16 %v362
    %v1425 = vunpack.c.l.b16 %v363
    %v1426 = vunpack.c.h.b16 %v363
    %v1427 = vunpack.c.l.b16 %v364
    %v1428 = vunpack.c.h.b16 %v364
    %v1429 = vunpack.c.l.b16 %v365
    %v1430 = vunpack.c.h.b16 %v365
    %v1431 = vunpack.c.l.b16 %v366
    %v1432 = vunpack.c.l.b16 %v367
    %v1433 = vunpack.c.h.b16 %v367
    %v1434 = vunpack.c.l.b16 %v368
    %v1435 = vunpack.c.h.b16 %v368
    %v1436 = vunpack.c.l.b16 %v369
    %v1437 = vunpack.c.h.b16 %v369
    %v1438 = vunpack.c.l.b16 %v370
    %v1439 = vunpack.c.h.b16 %v370
    %v1440 = vunpack.c.l.b16 %v371
    %v1441 = vunpack.c.h.b16 %v371
    %v1442 = vunpack.c.l.b16 %v372
    %v1443 = vunpack.c.h.b16 %v372
    %v1444 = vunpack.c.l.b16 %v373
    %v1445 = vunpack.c.h.b16 %v373
    %v1446 = vunpack.c.l.b16 %v374
    %v1447 = vunpack.c.h.b16 %v374
    %v1448 = vunpack.c.l.b16 %v375
    %v1449 = vunpack.c.h.b16 %v375
    %v1450 = vunpack.c.l.b16 %v376
    %v1451 = vunpack.c.h.b16 %v376
    %v1452 = vunpack.c.l.b16 %v377
    %v1453 = vunpack.c.h.b16 %v377
    %v1454 = vunpack.c.l.b16 %v378
    %v1455 = vunpack.c.l.b16 %v379
    %v1456 = vunpack.c.h.b16 %v379
    %v1457 = vunpack.c.l.b16 %v380
    %v1458 = vunpack.c.h.b16 %v380
    %v1459 = vunpack.c.l.b16 %v381
    %v1460 = vunpack.c.h.b16 %v381
    %v1461 = vunpack.c.l.b16 %v382
    %v1462 = vunpack.c.h.b16 %v382
    %v1463 = vunpack.c.l.b16 %v383
    %v1464 = vunpack.c.h.b16 %v383
    %v1465 = vunpack.c.l.b16 %v384
    %v1466 = vunpack.c.h.b16 %v384
    %v1467 = vunpack.c.l.b16 %v385
    %v1468 = vunpack.c.h.b16 %v385
    %v1469 = vunpack.c.l.b16 %v386
    %v1470 = vunpack.c.h.b16 %v386
    %v1471 = vunpack.c.l.b16 %v387
    %v1472 = vunpack.c.h.b16 %v387
    %v1473 = vunpack.c.l.b16 %v388
    %v1474 = vunpack.c.h.b16 %v388
    %v1475 = vunpack.c.l.b16 %v389
    %v1476 = vunpack.c.h.b16 %v389
    %v1477 = vunpack.c.l.b16 %v390
    %v1478 = vunpack.c.l.b16 %v391
    %v1479 = vunpack.c.h.b16 %v391
    %v1480 = vunpack.c.l.b16 %v392
    %v1481 = vunpack.c.h.b16 %v392
    %v1482 = vunpack.c.l.b16 %v393
    %v1483 = vunpack.c.h.b16 %v393
    %v1484 = vunpack.c.l.b16 %v394
    %v1485 = vunpack.c.h.b16 %v394
    %v1486 = vunpack.c.l.b16 %v395
    %v1487 = vunpack.c.h.b16 %v395
    %v1488 = vunpack.c.l.b16 %v396
    %v1489 = vunpack.c.h.b16 %v396
    %v1490 = vunpack.c.l.b16 %v397
    %v1491 = vunpack.c.h.b16 %v397
    %v1492 = vunpack.c.l.b16 %v398
    %v1493 = vunpack.c.h.b16 %v398
    %v1494 = vunpack.c.l.b16 %v399
    %v1495 = vunpack.c.h.b16 %v399
    %v1496 = vunpack.c.l.b16 %v400
    %v1497 = vunpack.c.h.b16 %v400
    %v1498 = vunpack.c.l.b16 %v401
    %v1499 = vunpack.c.h.b16 %v401
    %v1500 = vunpack.c.l.b16 %v402
    %v1501 = vunpack.c.l.b16 %v403
    %v1502 = vunpack.c.h.b16 %v403
    %v1503 = vunpack.c.l.b16 %v404
    %v1504 = vunpack.c.h.b16 %v404
    %v1505 = vunpack.c.l.b16 %v405
    %v1506 = vunpack.c.h.b16 %v405
    %v1507 = vunpack.c.l.b16 %v406
    %v1508 = vunpack.c.h.b16 %v406
    %v1509 = vunpack.c.l.b16 %v407
    %v1510 = vunpack.c.h.b16 %v407
    %v1511 = vunpack.c.l.b16 %v408
    %v1512 = vunpack.c.h.b16 %v408
    %v1513 = vunpack.c.l.b16 %v409
    %v1514 = vunpack.c.h.b16 %v409
    %v1515 = vunpack.c.l.b16 %v410
    %v1516 = vunpack.c.h.b16 %v410
    %v1517 = vunpack.c.l.b16 %v411
    %v1518 = vunpack.c.h.b16 %v411
    %v1519 = vunpack.c.l.b16 %v412
    %v1520 = vunpack.c.h.b16 %v412
    %v1521 = vunpack.c.l.b16 %v413
    %v1522 = vunpack.c.h.b16 %v413
    %v1523 = vunpack.c.l.b16 %v414
    %v1524 = vunpack.c.l.b16 %v415
    %v1525 = vunpack.c.h.b16 %v415
    %v1526 = vunpack.c.l.b16 %v416
    %v1527 = vunpack.c.h.b16 %v416
    %v1528 = vunpack.c.l.b16 %v417
    %v1529 = vunpack.c.h.b16 %v417
    %v1530 = vunpack.c.l.b16 %v418
    %v1531 = vunpack.c.h.b16 %v418
    %v1532 = vunpack.c.l.b16 %v419
    %v1533 = vunpack.c.h.b16 %v419
    %v1534 = vunpack.c.l.b16 %v420
    %v1535 = vunpack.c.h.b16 %v420
    %v1536 = vunpack.c.l.b16 %v421
    %v1537 = vunpack.c.h.b16 %v421
    %v1538 = vunpack.c.l.b16 %v422
    %v1539 = vunpack.c.h.b16 %v422
    %v1540 = vunpack.c.l.b16 %v423
    %v1541 = vunpack.c.h.b16 %v423
    %v1542 = vunpack.c.l.b16 %v424
    %v1543 = vunpack.c.h.b16 %v424
    %v1544 = vunpack.c.l.b16 %v425
    %v1545 = vunpack.c.h.b16 %v425
    %v1546 = vunpack.c.l.b16 %v426
    %v1547 = vpack.c.b16 %v834, %v811
    %v1548 = vpack.c.b16 %v835, %v812
    %v1549 = vpack.c.b16 %v836, %v813
    %v1550 = vpack.c.b16 %v837, %v814
    %v1551 = vpack.c.b16 %v838, %v815
    %v1552 = vpack.c.b16 %v839, %v816
    %v1553 = vpack.c.b16 %v840, %v817
    %v1554 = vpack.c.b16 %v841, %v818
    %v1555 = vpack.c.b16 %v842, %v819
    %v1556 = vpack.c.b16 %v843, %v820
    %v1557 = vpack.c.b16 %v844, %v821
    %v1558 = vpack.c.b16 %v845, %v822
    %v1559 = vpack.c.b16 %v846, %v823
    %v1560 = vpack.c.b16 %v847, %v824
    %v1561 = vpack.c.b16 %v848, %v825
    %v1562 = vpack.c.b16 %v849, %v826
    %v1563 = vpack.c.b16 %v850, %v827
    %v1564 = vpack.c.b16 %v851, %v828
    %v1565 = vpack.c.b16 %v852, %v829
    %v1566 = vpack.c.b16 %v853, %v830
    %v1567 = vpack.c.b16 %v854, %v831
    %v1568 = vpack.c.b16 %v855, %v832
    %v1569 = vpack.c.b16 %v856, %v833
    %v1570 = vpack.c.b16 %v880, %v857
    %v1571 = vpack.c.b16 %v881, %v858
    %v1572 = vpack.c.b16 %v882, %v859
    %v1573 = vpack.c.b16 %v883, %v860
    %v1574 = vpack.c.b16 %v884, %v861
    %v1575 = vpack.c.b16 %v885, %v862
    %v1576 = vpack.c.b16 %v886, %v863
    %v1577 = vpack.c.b16 %v887, %v864
    %v1578 = vpack.c.b16 %v888, %v865
    %v1579 = vpack.c.b16 %v889, %v866
    %v1580 = vpack.c.b16 %v890, %v867
    %v1581 = vpack.c.b16 %v891, %v868
    %v1582 = vpack.c.b16 %v892, %v869
    %v1583 = vpack.c.b16 %v893, %v870
    %v1584 = vpack.c.b16 %v894, %v871
    %v1585 = vpack.c.b16 %v895, %v872
    %v1586 = vpack.c.b16 %v896, %v873
    %v1587 = vpack.c.b16 %v897, %v874
    %v1588 = vpack.c.b16 %v898, %v875
    %v1589 = vpack.c.b16 %v899, %v876
    %v1590 = vpack.c.b16 %v900, %v877
    %v1591 = vpack.c.b16 %v901, %v878
    %v1592 = vpack.c.b16 %v902, %v879
    %v1593 = vpack.c.b16 %v926, %v903
    %v1594 = vpack.c.b16 %v927, %v904
    %v1595 = vpack.c.b16 %v928, %v905
    %v1596 = vpack.c.b16 %v929, %v906
    %v1597 = vpack.c.b16 %v930, %v907
    %v1598 = vpack.c.b16 %v931, %v908
    %v1599 = vpack.c.b16 %v932, %v909
    %v1600 = vpack.c.b16 %v933, %v910
    %v1601 = vpack.c.b16 %v934, %v911
    %v1602 = vpack.c.b16 %v935, %v912
    %v1603 = vpack.c.b16 %v936, %v913
    %v1604 = vpack.c.b16 %v937, %v914
    %v1605 = vpack.c.b16 %v938, %v915
    %v1606 = vpack.c.b16 %v939, %v916
    %v1607 = vpack.c.b16 %v940, %v917
    %v1608 = vpack.c.b16 %v941, %v918
    %v1609 = vpack.c.b16 %v942, %v919
    %v1610 = vpack.c.b16 %v943, %v920
    %v1611 = vpack.c.b16 %v944, %v921
    %v1612 = vpack.c.b16 %v945, %v922
    %v1613 = vpack.c.b16 %v946, %v923
    %v1614 = vpack.c.b16 %v947, %v924
    %v1615 = vpack.c.b16 %v948, %v925
    %v1616 = vpack.c.b16 %v972, %v949
    %v1617 = vpack.c.b16 %v973, %v950
    %v1618 = vpack.c.b16 %v974, %v951
    %v1619 = vpack.c.b16 %v975, %v952
    %v1620 = vpack.c.b16 %v976, %v953
    %v1621 = vpack.c.b16 %v977, %v954
    %v1622 = vpack.c.b16 %v978, %v955
    %v1623 = vpack.c.b16 %v979, %v956
    %v1624 = vpack.c.b16 %v980, %v957
    %v1625 = vpack.c.b16 %v981, %v958
    %v1626 = vpack.c.b16 %v982, %v959
    %v1627 = vpack.c.b16 %v983, %v960
    %v1628 = vpack.c.b16 %v984, %v961
    %v1629 = vpack.c.b16 %v985, %v962
    %v1630 = vpack.c.b16 %v986, %v963
    %v1631 = vpack.c.b16 %v987, %v964
    %v1632 = vpack.c.b16 %v988, %v965
    %v1633 = vpack.c.b16 %v989, %v966
    %v1634 = vpack.c.b16 %v990, %v967
    %v1635 = vpack.c.b16 %v991, %v968
    %v1636 = vpack.c.b16 %v992, %v969
    %v1637 = vpack.c.b16 %v993, %v970
    %v1638 = vpack.c.b16 %v994, %v971
    %v1639 = vpack.c.b16 %v1018, %v995
    %v1640 = vpack.c.b16 %v1019, %v996
    %v1641 = vpack.c.b16 %v1020, %v997
    %v1642 = vpack.c.b16 %v1021, %v998
    %v1643 = vpack.c.b16 %v1022, %v999
    %v1644 = vpack.c.b16 %v1023, %v1000
    %v1645 = vpack.c.b16 %v1024, %v1001
    %v1646 = vpack.c.b16 %v1025, %v1002
    %v1647 = vpack.c.b16 %v1026, %v1003
    %v1648 = vpack.c.b16 %v1027, %v1004
    %v1649 = vpack.c.b16 %v1028, %v1005
    %v1650 = vpack.c.b16 %v1029, %v1006
    %v1651 = vpack.c.b16 %v1030, %v1007
    %v1652 = vpack.c.b16 %v1031, %v1008
    %v1653 = vpack.c.b16 %v1032, %v1009
    %v1654 = vpack.c.b16 %v1033, %v1010
    %v1655 = vpack.c.b16 %v1034, %v1011
    %v1656 = vpack.c.b16 %v1035, %v1012
    %v1657 = vpack.c.b16 %v1036, %v1013
    %v1658 = vpack.c.b16 %v1037, %v1014
    %v1659 = vpack.c.b16 %v1038, %v1015
    %v1660 = vpack.c.b16 %v1039, %v1016
    %v1661 = vpack.c.b16 %v1040, %v1017
    %v1662 = vpack.c.b16 %v1064, %v1041
    %v1663 = vpack.c.b16 %v1065, %v1042
    %v1664 = vpack.c.b16 %v1066, %v1043
    %v1665 = vpack.c.b16 %v1067, %v1044
    %v1666 = vpack.c.b16 %v1068, %v1045
    %v1667 = vpack.c.b16 %v1069, %v1046
    %v1668 = vpack.c.b16 %v1070, %v1047
    %v1669 = vpack.c.b16 %v1071, %v1048
    %v1670 = vpack.c.b16 %v1072, %v1049
    %v1671 = vpack.c.b16 %v1073, %v1050
    %v1672 = vpack.c.b16 %v1074, %v1051
    %v1673 = vpack.c.b16 %v1075, %v1052
    %v1674 = vpack.c.b16 %v1076, %v1053
    %v1675 = vpack.c.b16 %v1077, %v1054
    %v1676 = vpack.c.b16 %v1078, %v1055
    %v1677 = vpack.c.b16 %v1079, %v1056
    %v1678 = vpack.c.b16 %v1080, %v1057
    %v1679 = vpack.c.b16 %v1081, %v1058
    %v1680 = vpack.c.b16 %v1082, %v1059
    %v1681 = vpack.c.b16 %v1083, %v1060
    %v1682 = vpack.c.b16 %v1084, %v1061
    %v1683 = vpack.c.b16 %v1085, %v1062
    %v1684 = vpack.c.b16 %v1086, %v1063
    %v1685 = vpack.c.b16 %v1110, %v1087
    %v1686 = vpack.c.b16 %v1111, %v1088
    %v1687 = vpack.c.b16 %v1112, %v1089
    %v1688 = vpack.c.b16 %v1113, %v1090
    %v1689 = vpack.c.b16 %v1114, %v1091
    %v1690 = vpack.c.b16 %v1115, %v1092
    %v1691 = vpack.c.b16 %v1116, %v1093
    %v1692 = vpack.c.b16 %v1117, %v1094
    %v1693 = vpack.c.b16 %v1118, %v1095
    %v1694 = vpack.c.b16 %v1119, %v1096
    %v1695 = vpack.c.b16 %v1120, %v1097
    %v1696 = vpack.c.b16 %v1121, %v1098
    %v1697 = vpack.c.b16 %v1122, %v1099
    %v1698 = vpack.c.b16 %v1123, %v1100
    %v1699 = vpack.c.b16 %v1124, %v1101
    %v1700 = vpack.c.b16 %v1125, %v1102
    %v1701 = vpack.c.b16 %v1126, %v1103
    %v1702 = vpack.c.b16 %v1127, %v1104
    %v1703 = vpack.c.b16 %v1128, %v1105
    %v1704 = vpack.c.b16 %v1129, %v1106
    %v1705 = vpack.c.b16 %v1130, %v1107
    %v1706 = vpack.c.b16 %v1131, %v1108
    %v1707 = vpack.c.b16 %v1132, %v1109
    %v1708 = vpack.c.b16 %v1156, %v1133
    %v1709 = vpack.c.b16 %v1157, %v1134
    %v1710 = vpack.c.b16 %v1158, %v1135
    %v1711 = vpack.c.b16 %v1159, %v1136
    %v1712 = vpack.c.b16 %v1160, %v1137
    %v1713 = vpack.c.b16 %v1161, %v1138
    %v1714 = vpack.c.b16 %v1162, %v1139
    %v1715 = vpack.c.b16 %v1163, %v1140
    %v1716 = vpack.c.b16 %v1164, %v1141
    %v1717 = vpack.c.b16 %v1165, %v1142
    %v1718 = vpack.c.b16 %v1166, %v1143
    %v1719 = vpack.c.b16 %v1167, %v1144
    %v1720 = vpack.c.b16 %v1168, %v1145
    %v1721 = vpack.c.b16 %v1169, %v1146
    %v1722 = vpack.c.b16 %v1170, %v1147
    %v1723 = vpack.c.b16 %v1171, %v1148
    %v1724 = vpack.c.b16 %v1172, %v1149
    %v1725 = vpack.c.b16 %v1173, %v1150
    %v1726 = vpack.c.b16 %v1174, %v1151
    %v1727 = vpack.c.b16 %v1175, %v1152
    %v1728 = vpack.c.b16 %v1176, %v1153
    %v1729 = vpack.c.b16 %v1177, %v1154
    %v1730 = vpack.c.b16 %v1178, %v1155
    %v1731 = vpack.c.b16 %v1202, %v1179
    %v1732 = vpack.c.b16 %v1203, %v1180
    %v1733 = vpack.c.b16 %v1204, %v1181
    %v1734 = vpack.c.b16 %v1205, %v1182
    %v1735 = vpack.c.b16 %v1206, %v1183
    %v1736 = vpack.c.b16 %v1207, %v1184
    %v1737 = vpack.c.b16 %v1208, %v1185
    %v1738 = vpack.c.b16 %v1209, %v1186
    %v1739 = vpack.c.b16 %v1210, %v1187
    %v1740 = vpack.c.b16 %v1211, %v1188
    %v1741 = vpack.c.b16 %v1212, %v1189
    %v1742 = vpack.c.b16 %v1213, %v1190
    %v1743 = vpack.c.b16 %v1214, %v1191
    %v1744 = vpack.c.b16 %v1215, %v1192
    %v1745 = vpack.c.b16 %v1216, %v1193
    %v1746 = vpack.c.b16 %v1217, %v1194
    %v1747 = vpack.c.b16 %v1218, %v1195
    %v1748 = vpack.c.b16 %v1219, %v1196
    %v1749 = vpack.c.b16 %v1220, %v1197
    %v1750 = vpack.c.b16 %v1221, %v1198
    %v1751 = vpack.c.b16 %v1222, %v1199
    %v1752 = vpack.c.b16 %v1223, %v1200
    %v1753 = vpack.c.b16 %v1224, %v1201
    %v1754 = vpack.c.b16 %v1248, %v1225
    %v1755 = vpack.c.b16 %v1249, %v1226
    %v1756 = vpack.c.b16 %v1250, %v1227
    %v1757 = vpack.c.b16 %v1251, %v1228
    %v1758 = vpack.c.b16 %v1252, %v1229
    %v1759 = vpack.c.b16 %v1253, %v1230
    %v1760 = vpack.c.b16 %v1254, %v1231
    %v1761 = vpack.c.b16 %v1255, %v1232
    %v1762 = vpack.c.b16 %v1256, %v1233
    %v1763 = vpack.c.b16 %v1257, %v1234
    %v1764 = vpack.c.b16 %v1258, %v1235
    %v1765 = vpack.c.b16 %v1259, %v1236
    %v1766 = vpack.c.b16 %v1260, %v1237
    %v1767 = vpack.c.b16 %v1261, %v1238
    %v1768 = vpack.c.b16 %v1262, %v1239
    %v1769 = vpack.c.b16 %v1263, %v1240
    %v1770 = vpack.c.b16 %v1264, %v1241
    %v1771 = vpack.c.b16 %v1265, %v1242
    %v1772 = vpack.c.b16 %v1266, %v1243
    %v1773 = vpack.c.b16 %v1267, %v1244
    %v1774 = vpack.c.b16 %v1268, %v1245
    %v1775 = vpack.c.b16 %v1269, %v1246
    %v1776 = vpack.c.b16 %v1270, %v1247
    %v1777 = vpack.c.b16 %v1294, %v1271
    %v1778 = vpack.c.b16 %v1295, %v1272
    %v1779 = vpack.c.b16 %v1296, %v1273
    %v1780 = vpack.c.b16 %v1297, %v1274
    %v1781 = vpack.c.b16 %v1298, %v1275
    %v1782 = vpack.c.b16 %v1299, %v1276
    %v1783 = vpack.c.b16 %v1300, %v1277
    %v1784 = vpack.c.b16 %v1301, %v1278
    %v1785 = vpack.c.b16 %v1302, %v1279
    %v1786 = vpack.c.b16 %v1303, %v1280
    %v1787 = vpack.c.b16 %v1304, %v1281
    %v1788 = vpack.c.b16 %v1305, %v1282
    %v1789 = vpack.c.b16 %v1306, %v1283
    %v1790 = vpack.c.b16 %v1307, %v1284
    %v1791 = vpack.c.b16 %v1308, %v1285
    %v1792 = vpack.c.b16 %v1309, %v1286
    %v1793 = vpack.c.b16 %v1310, %v1287
    %v1794 = vpack.c.b16 %v1311, %v1288
    %v1795 = vpack.c.b16 %v1312, %v1289
    %v1796 = vpack.c.b16 %v1313, %v1290
    %v1797 = vpack.c.b16 %v1314, %v1291
    %v1798 = vpack.c.b16 %v1315, %v1292
    %v1799 = vpack.c.b16 %v1316, %v1293
    %v1800 = vpack.c.b16 %v1340, %v1317
    %v1801 = vpack.c.b16 %v1341, %v1318
    %v1802 = vpack.c.b16 %v1342, %v1319
    %v1803 = vpack.c.b16 %v1343, %v1320
    %v1804 = vpack.c.b16 %v1344, %v1321
    %v1805 = vpack.c.b16 %v1345, %v1322
    %v1806 = vpack.c.b16 %v1346, %v1323
    %v1807 = vpack.c.b16 %v1347, %v1324
    %v1808 = vpack.c.b16 %v1348, %v1325
    %v1809 = vpack.c.b16 %v1349, %v1326
    %v1810 = vpack.c.b16 %v1350, %v1327
    %v1811 = vpack.c.b16 %v1351, %v1328
    %v1812 = vpack.c.b16 %v1352, %v1329
    %v1813 = vpack.c.b16 %v1353, %v1330
    %v1814 = vpack.c.b16 %v1354, %v1331
    %v1815 = vpack.c.b16 %v1355, %v1332
    %v1816 = vpack.c.b16 %v1356, %v1333
    %v1817 = vpack.c.b16 %v1357, %v1334
    %v1818 = vpack.c.b16 %v1358, %v1335
    %v1819 = vpack.c.b16 %v1359, %v1336
    %v1820 = vpack.c.b16 %v1360, %v1337
    %v1821 = vpack.c.b16 %v1361, %v1338
    %v1822 = vpack.c.b16 %v1362, %v1339
    %v1823 = vpack.c.b16 %v1386, %v1363
    %v1824 = vpack.c.b16 %v1387, %v1364
    %v1825 = vpack.c.b16 %v1388, %v1365
    %v1826 = vpack.c.b16 %v1389, %v1366
    %v1827 = vpack.c.b16 %v1390, %v1367
    %v1828 = vpack.c.b16 %v1391, %v1368
    %v1829 = vpack.c.b16 %v1392, %v1369
    %v1830 = vpack.c.b16 %v1393, %v1370
    %v1831 = vpack.c.b16 %v1394, %v1371
    %v1832 = vpack.c.b16 %v1395, %v1372
    %v1833 = vpack.c.b16 %v1396, %v1373
    %v1834 = vpack.c.b16 %v1397, %v1374
    %v1835 = vpack.c.b16 %v1398, %v1375
    %v1836 = vpack.c.b16 %v1399, %v1376
    %v1837 = vpack.c.b16 %v1400, %v1377
    %v1838 = vpack.c.b16 %v1401, %v1378
    %v1839 = vpack.c.b16 %v1402, %v1379
    %v1840 = vpack.c.b16 %v1403, %v1380
    %v1841 = vpack.c.b16 %v1404, %v1381
    %v1842 = vpack.c.b16 %v1405, %v1382
    %v1843 = vpack.c.b16 %v1406, %v1383
    %v1844 = vpack.c.b16 %v1407, %v1384
    %v1845 = vpack.c.b16 %v1408, %v1385
    %v1846 = vpack.c.b16 %v1432, %v1409
    %v1847 = vpack.c.b16 %v1433, %v1410
    %v1848 = vpack.c.b16 %v1434, %v1411
    %v1849 = vpack.c.b16 %v1435, %v1412
    %v1850 = vpack.c.b16 %v1436, %v1413
    %v1851 = vpack.c.b16 %v1437, %v1414
    %v1852 = vpack.c.b16 %v1438, %v1415
    %v1853 = vpack.c.b16 %v1439, %v1416
    %v1854 = vpack.c.b16 %v1440, %v1417
    %v1855 = vpack.c.b16 %v1441, %v1418
    %v1856 = vpack.c.b16 %v1442, %v1419
    %v1857 = vpack.c.b16 %v1443, %v1420
    %v1858 = vpack.c.b16 %v1444, %v1421
    %v1859 = vpack.c.b16 %v1445, %v1422
    %v1860 = vpack.c.b16 %v1446, %v1423
    %v1861 = vpack.c.b16 %v1447, %v1424
    %v1862 = vpack.c.b16 %v1448, %v1425
    %v1863 = vpack.c.b16 %v1449, %v1426
    %v1864 = vpack.c.b16 %v1450, %v1427
    %v1865 = vpack.c.b16 %v1451, %v1428
    %v1866 = vpack.c.b16 %v1452, %v1429
    %v1867 = vpack.c.b16 %v1453, %v1430
    %v1868 = vpack.c.b16 %v1454, %v1431
    %v1869 = vpack.c.b16 %v1478, %v1455
    %v1870 = vpack.c.b16 %v1479, %v1456
    %v1871 = vpack.c.b16 %v1480, %v1457
    %v1872 = vpack.c.b16 %v1481, %v1458
    %v1873 = vpack.c.b16 %v1482, %v1459
    %v1874 = vpack.c.b16 %v1483, %v1460
    %v1875 = vpack.c.b16 %v1484, %v1461
    %v1876 = vpack.c.b16 %v1485, %v1462
    %v1877 = vpack.c.b16 %v1486, %v1463
    %v1878 = vpack.c.b16 %v1487, %v1464
    %v1879 = vpack.c.b16 %v1488, %v1465
    %v1880 = vpack.c.b16 %v1489, %v1466
    %v1881 = vpack.c.b16 %v1490, %v1467
    %v1882 = vpack.c.b16 %v1491, %v1468
    %v1883 = vpack.c.b16 %v1492, %v1469
    %v1884 = vpack.c.b16 %v1493, %v1470
    %v1885 = vpack.c.b16 %v1494, %v1471
    %v1886 = vpack.c.b16 %v1495, %v1472
    %v1887 = vpack.c.b16 %v1496, %v1473
    %v1888 = vpack.c.b16 %v1497, %v1474
    %v1889 = vpack.c.b16 %v1498, %v1475
    %v1890 = vpack.c.b16 %v1499, %v1476
    %v1891 = vpack.c.b16 %v1500, %v1477
    %v1892 = vpack.c.b16 %v1524, %v1501
    %v1893 = vpack.c.b16 %v1525, %v1502
    %v1894 = vpack.c.b16 %v1526, %v1503
    %v1895 = vpack.c.b16 %v1527, %v1504
    %v1896 = vpack.c.b16 %v1528, %v1505
    %v1897 = vpack.c.b16 %v1529, %v1506
    %v1898 = vpack.c.b16 %v1530, %v1507
    %v1899 = vpack.c.b16 %v1531, %v1508
    %v1900 = vpack.c.b16 %v1532, %v1509
    %v1901 = vpack.c.b16 %v1533, %v1510
    %v1902 = vpack.c.b16 %v1534, %v1511
    %v1903 = vpack.c.b16 %v1535, %v1512
    %v1904 = vpack.c.b16 %v1536, %v1513
    %v1905 = vpack.c.b16 %v1537, %v1514
    %v1906 = vpack.c.b16 %v1538, %v1515
    %v1907 = vpack.c.b16 %v1539, %v1516
    %v1908 = vpack.c.b16 %v1540, %v1517
    %v1909 = vpack.c.b16 %v1541, %v1518
    %v1910 = vpack.c.b16 %v1542, %v1519
    %v1911 = vpack.c.b16 %v1543, %v1520
    %v1912 = vpack.c.b16 %v1544, %v1521
    %v1913 = vpack.c.b16 %v1545, %v1522
    %v1914 = vpack.c.b16 %v1546, %v1523
    %2283 = vmatprep.subr.bf16.mxu0 %v1548
    %2284 = vmatpush1.bf16.msra.mxu0 %v1547
    %2285 = vmatprep.subr.bf16.mxu0 %v1571
    %2286 = vmatpush1.bf16.msra.mxu0 %v1570
    %2287 = vmatprep.subr.bf16.mxu0 %v1594
    %2288 = vmatpush1.bf16.msra.mxu0 %v1593
    %2289 = vmatprep.subr.bf16.mxu0 %v1617
    %2290 = vmatpush1.bf16.msra.mxu0 %v1616
    %2291 = vmatprep.subr.bf16.mxu0 %v1640
    %2292 = vmatpush1.bf16.msra.mxu0 %v1639
    %2293 = vmatprep.subr.bf16.mxu0 %v1663
    %2294 = vmatpush1.bf16.msra.mxu0 %v1662
    %2295 = vmatprep.subr.bf16.mxu0 %v1686
    %2296 = vmatpush1.bf16.msra.mxu0 %v1685
    %2297 = vmatprep.subr.bf16.mxu0 %v1709
    %2298 = vmatpush1.bf16.msra.mxu0 %v1708
    %2299 = vmatprep.subr.bf16.mxu0 %v1732
    %2300 = vmatpush1.bf16.msra.mxu0 %v1731
    %2301 = vmatprep.subr.bf16.mxu0 %v1755
    %2302 = vmatpush1.bf16.msra.mxu0 %v1754
    %2303 = vmatprep.subr.bf16.mxu0 %v1778
    %2304 = vmatpush1.bf16.msra.mxu0 %v1777
    %2305 = vmatprep.subr.bf16.mxu0 %v1801
    %2306 = vmatpush1.bf16.msra.mxu0 %v1800
    %2307 = vmatprep.subr.bf16.mxu0 %v1824
    %2308 = vmatpush1.bf16.msra.mxu0 %v1823
    %2309 = vmatprep.subr.bf16.mxu0 %v1847
    %2310 = vmatpush1.bf16.msra.mxu0 %v1846
    %2311 = vmatprep.subr.bf16.mxu0 %v1870
    %2312 = vmatpush1.bf16.msra.mxu0 %v1869
    %2313 = vmatprep.subr.bf16.mxu0 %v1893
    %2314 = vmatpush1.bf16.msra.mxu0 %v1892
    %2315 = vmatprep.mubr.bf16.mxu0 %v42
    %2316 = vmatmul.mubr.bf16.gmra.mrb[0].mxu0 %v41
    %v2317 = vpop.f32.mrb[0].mxu0
    %v2318 = vadd.f32 0.0, %v2317
    %v2319 = vpop.f32.mrb[0].mxu0
    %v2320 = vadd.f32 0.0, %v2319
    %v2321 = vpop.f32.mrb[0].mxu0
    %v2322 = vpop.f32.mrb[0].mxu0
    %2323 = vdwg.mxu0
    %2324 = vmatprep.subr.bf16.mxu0 %v1550
    %2325 = vmatpush1.bf16.msra.mxu0 %v1549
    %2326 = vmatprep.subr.bf16.mxu0 %v1573
    %2327 = vmatpush1.bf16.msra.mxu0 %v1572
    %2328 = vmatprep.subr.bf16.mxu0 %v1596
    %2329 = vmatpush1.bf16.msra.mxu0 %v1595
    %2330 = vmatprep.subr.bf16.mxu0 %v1619
    %2331 = vmatpush1.bf16.msra.mxu0 %v1618
    %2332 = vmatprep.subr.bf16.mxu0 %v1642
    %2333 = vmatpush1.bf16.msra.mxu0 %v1641
    %2334 = vmatprep.subr.bf16.mxu0 %v1665
    %2335 = vmatpush1.bf16.msra.mxu0 %v1664
    %2336 = vmatprep.subr.bf16.mxu0 %v1688
    %2337 = vmatpush1.bf16.msra.mxu0 %v1687
    %2338 = vmatprep.subr.bf16.mxu0 %v1711
    %2339 = vmatpush1.bf16.msra.mxu0 %v1710
    %2340 = vmatprep.subr.bf16.mxu0 %v1734
    %2341 = vmatpush1.bf16.msra.mxu0 %v1733
    %2342 = vmatprep.subr.bf16.mxu0 %v1757
    %2343 = vmatpush1.bf16.msra.mxu0 %v1756
    %2344 = vmatprep.subr.bf16.mxu0 %v1780
    %2345 = vmatpush1.bf16.msra.mxu0 %v1779
    %2346 = vmatprep.subr.bf16.mxu0 %v1803
    %2347 = vmatpush1.bf16.msra.mxu0 %v1802
    %2348 = vmatprep.subr.bf16.mxu0 %v1826
    %2349 = vmatpush1.bf16.msra.mxu0 %v1825
    %2350 = vmatprep.subr.bf16.mxu0 %v1849
    %2351 = vmatpush1.bf16.msra.mxu0 %v1848
    %2352 = vmatprep.subr.bf16.mxu0 %v1872
    %2353 = vmatpush1.bf16.msra.mxu0 %v1871
    %2354 = vmatprep.subr.bf16.mxu0 %v1895
    %2355 = vmatpush1.bf16.msra.mxu0 %v1894
    %2356 = vmatprep.mubr.bf16.mxu0 %v42
    %2357 = vmatmul.mubr.bf16.gmra.mrb[0].mxu0 %v41
    %v2358 = vpop.f32.mrb[0].mxu0
    %v2359 = vadd.f32 0.0, %v2358
    %v2360 = vpop.f32.mrb[0].mxu0
    %v2361 = vadd.f32 0.0, %v2360
    %v2362 = vpop.f32.mrb[0].mxu0
    %v2363 = vpop.f32.mrb[0].mxu0
    %2364 = vdwg.mxu0
    %2365 = vmatprep.subr.bf16.mxu0 %v1552
    %2366 = vmatpush1.bf16.msra.mxu0 %v1551
    %2367 = vmatprep.subr.bf16.mxu0 %v1575
    %2368 = vmatpush1.bf16.msra.mxu0 %v1574
    %2369 = vmatprep.subr.bf16.mxu0 %v1598
    %2370 = vmatpush1.bf16.msra.mxu0 %v1597
    %2371 = vmatprep.subr.bf16.mxu0 %v1621
    %2372 = vmatpush1.bf16.msra.mxu0 %v1620
    %2373 = vmatprep.subr.bf16.mxu0 %v1644
    %2374 = vmatpush1.bf16.msra.mxu0 %v1643
    %2375 = vmatprep.subr.bf16.mxu0 %v1667
    %2376 = vmatpush1.bf16.msra.mxu0 %v1666
    %2377 = vmatprep.subr.bf16.mxu0 %v1690
    %2378 = vmatpush1.bf16.msra.mxu0 %v1689
    %2379 = vmatprep.subr.bf16.mxu0 %v1713
    %2380 = vmatpush1.bf16.msra.mxu0 %v1712
    %2381 = vmatprep.subr.bf16.mxu0 %v1736
    %2382 = vmatpush1.bf16.msra.mxu0 %v1735
    %2383 = vmatprep.subr.bf16.mxu0 %v1759
    %2384 = vmatpush1.bf16.msra.mxu0 %v1758
    %2385 = vmatprep.subr.bf16.mxu0 %v1782
    %2386 = vmatpush1.bf16.msra.mxu0 %v1781
    %2387 = vmatprep.subr.bf16.mxu0 %v1805
    %2388 = vmatpush1.bf16.msra.mxu0 %v1804
    %2389 = vmatprep.subr.bf16.mxu0 %v1828
    %2390 = vmatpush1.bf16.msra.mxu0 %v1827
    %2391 = vmatprep.subr.bf16.mxu0 %v1851
    %2392 = vmatpush1.bf16.msra.mxu0 %v1850
    %2393 = vmatprep.subr.bf16.mxu0 %v1874
    %2394 = vmatpush1.bf16.msra.mxu0 %v1873
    %2395 = vmatprep.subr.bf16.mxu0 %v1897
    %2396 = vmatpush1.bf16.msra.mxu0 %v1896
    %2397 = vmatprep.mubr.bf16.mxu0 %v42
    %2398 = vmatmul.mubr.bf16.gmra.mrb[0].mxu0 %v41
    %v2399 = vpop.f32.mrb[0].mxu0
    %v2400 = vadd.f32 0.0, %v2399
    %v2401 = vpop.f32.mrb[0].mxu0
    %v2402 = vadd.f32 0.0, %v2401
    %v2403 = vpop.f32.mrb[0].mxu0
    %v2404 = vpop.f32.mrb[0].mxu0
    %2405 = vdwg.mxu0
    %2406 = vmatprep.subr.bf16.mxu0 %v1554
    %2407 = vmatpush1.bf16.msra.mxu0 %v1553
    %2408 = vmatprep.subr.bf16.mxu0 %v1577
    %2409 = vmatpush1.bf16.msra.mxu0 %v1576
    %2410 = vmatprep.subr.bf16.mxu0 %v1600
    %2411 = vmatpush1.bf16.msra.mxu0 %v1599
    %2412 = vmatprep.subr.bf16.mxu0 %v1623
    %2413 = vmatpush1.bf16.msra.mxu0 %v1622
    %2414 = vmatprep.subr.bf16.mxu0 %v1646
    %2415 = vmatpush1.bf16.msra.mxu0 %v1645
    %2416 = vmatprep.subr.bf16.mxu0 %v1669
    %2417 = vmatpush1.bf16.msra.mxu0 %v1668
    %2418 = vmatprep.subr.bf16.mxu0 %v1692
    %2419 = vmatpush1.bf16.msra.mxu0 %v1691
    %2420 = vmatprep.subr.bf16.mxu0 %v1715
    %2421 = vmatpush1.bf16.msra.mxu0 %v1714
    %2422 = vmatprep.subr.bf16.mxu0 %v1738
    %2423 = vmatpush1.bf16.msra.mxu0 %v1737
    %2424 = vmatprep.subr.bf16.mxu0 %v1761
    %2425 = vmatpush1.bf16.msra.mxu0 %v1760
    %2426 = vmatprep.subr.bf16.mxu0 %v1784
    %2427 = vmatpush1.bf16.msra.mxu0 %v1783
    %2428 = vmatprep.subr.bf16.mxu0 %v1807
    %2429 = vmatpush1.bf16.msra.mxu0 %v1806
    %2430 = vmatprep.subr.bf16.mxu0 %v1830
    %2431 = vmatpush1.bf16.msra.mxu0 %v1829
    %2432 = vmatprep.subr.bf16.mxu0 %v1853
    %2433 = vmatpush1.bf16.msra.mxu0 %v1852
    %2434 = vmatprep.subr.bf16.mxu0 %v1876
    %2435 = vmatpush1.bf16.msra.mxu0 %v1875
    %2436 = vmatprep.subr.bf16.mxu0 %v1899
    %2437 = vmatpush1.bf16.msra.mxu0 %v1898
    %2438 = vmatprep.mubr.bf16.mxu0 %v42
    %2439 = vmatmul.mubr.bf16.gmra.mrb[0].mxu0 %v41
    %v2440 = vpop.f32.mrb[0].mxu0
    %v2441 = vadd.f32 0.0, %v2440
    %v2442 = vpop.f32.mrb[0].mxu0
    %v2443 = vadd.f32 0.0, %v2442
    %v2444 = vpop.f32.mrb[0].mxu0
    %v2445 = vpop.f32.mrb[0].mxu0
    %2446 = vdwg.mxu0
    %2447 = vmatprep.subr.bf16.mxu0 %v1556
    %2448 = vmatpush1.bf16.msra.mxu0 %v1555
    %2449 = vmatprep.subr.bf16.mxu0 %v1579
    %2450 = vmatpush1.bf16.msra.mxu0 %v1578
    %2451 = vmatprep.subr.bf16.mxu0 %v1602
    %2452 = vmatpush1.bf16.msra.mxu0 %v1601
    %2453 = vmatprep.subr.bf16.mxu0 %v1625
    %2454 = vmatpush1.bf16.msra.mxu0 %v1624
    %2455 = vmatprep.subr.bf16.mxu0 %v1648
    %2456 = vmatpush1.bf16.msra.mxu0 %v1647
    %2457 = vmatprep.subr.bf16.mxu0 %v1671
    %2458 = vmatpush1.bf16.msra.mxu0 %v1670
    %2459 = vmatprep.subr.bf16.mxu0 %v1694
    %2460 = vmatpush1.bf16.msra.mxu0 %v1693
    %2461 = vmatprep.subr.bf16.mxu0 %v1717
    %2462 = vmatpush1.bf16.msra.mxu0 %v1716
    %2463 = vmatprep.subr.bf16.mxu0 %v1740
    %2464 = vmatpush1.bf16.msra.mxu0 %v1739
    %2465 = vmatprep.subr.bf16.mxu0 %v1763
    %2466 = vmatpush1.bf16.msra.mxu0 %v1762
    %2467 = vmatprep.subr.bf16.mxu0 %v1786
    %2468 = vmatpush1.bf16.msra.mxu0 %v1785
    %2469 = vmatprep.subr.bf16.mxu0 %v1809
    %2470 = vmatpush1.bf16.msra.mxu0 %v1808
    %2471 = vmatprep.subr.bf16.mxu0 %v1832
    %2472 = vmatpush1.bf16.msra.mxu0 %v1831
    %2473 = vmatprep.subr.bf16.mxu0 %v1855
    %2474 = vmatpush1.bf16.msra.mxu0 %v1854
    %2475 = vmatprep.subr.bf16.mxu0 %v1878
    %2476 = vmatpush1.bf16.msra.mxu0 %v1877
    %2477 = vmatprep.subr.bf16.mxu0 %v1901
    %2478 = vmatpush1.bf16.msra.mxu0 %v1900
    %2479 = vmatprep.mubr.bf16.mxu0 %v42
    %2480 = vmatmul.mubr.bf16.gmra.mrb[0].mxu0 %v41
    %v2481 = vpop.f32.mrb[0].mxu0
    %v2482 = vadd.f32 0.0, %v2481
    %v2483 = vpop.f32.mrb[0].mxu0
    %v2484 = vadd.f32 0.0, %v2483
    %v2485 = vpop.f32.mrb[0].mxu0
    %v2486 = vpop.f32.mrb[0].mxu0
    %2487 = vdwg.mxu0
    %2488 = vmatprep.subr.bf16.mxu0 %v1558
    %2489 = vmatpush1.bf16.msra.mxu0 %v1557
    %2490 = vmatprep.subr.bf16.mxu0 %v1581
    %2491 = vmatpush1.bf16.msra.mxu0 %v1580
    %2492 = vmatprep.subr.bf16.mxu0 %v1604
    %2493 = vmatpush1.bf16.msra.mxu0 %v1603
    %2494 = vmatprep.subr.bf16.mxu0 %v1627
    %2495 = vmatpush1.bf16.msra.mxu0 %v1626
    %2496 = vmatprep.subr.bf16.mxu0 %v1650
    %2497 = vmatpush1.bf16.msra.mxu0 %v1649
    %2498 = vmatprep.subr.bf16.mxu0 %v1673
    %2499 = vmatpush1.bf16.msra.mxu0 %v1672
    %2500 = vmatprep.subr.bf16.mxu0 %v1696
    %2501 = vmatpush1.bf16.msra.mxu0 %v1695
    %2502 = vmatprep.subr.bf16.mxu0 %v1719
    %2503 = vmatpush1.bf16.msra.mxu0 %v1718
    %2504 = vmatprep.subr.bf16.mxu0 %v1742
    %2505 = vmatpush1.bf16.msra.mxu0 %v1741
    %2506 = vmatprep.subr.bf16.mxu0 %v1765
    %2507 = vmatpush1.bf16.msra.mxu0 %v1764
    %2508 = vmatprep.subr.bf16.mxu0 %v1788
    %2509 = vmatpush1.bf16.msra.mxu0 %v1787
    %2510 = vmatprep.subr.bf16.mxu0 %v1811
    %2511 = vmatpush1.bf16.msra.mxu0 %v1810
    %2512 = vmatprep.subr.bf16.mxu0 %v1834
    %2513 = vmatpush1.bf16.msra.mxu0 %v1833
    %2514 = vmatprep.subr.bf16.mxu0 %v1857
    %2515 = vmatpush1.bf16.msra.mxu0 %v1856
    %2516 = vmatprep.subr.bf16.mxu0 %v1880
    %2517 = vmatpush1.bf16.msra.mxu0 %v1879
    %2518 = vmatprep.subr.bf16.mxu0 %v1903
    %2519 = vmatpush1.bf16.msra.mxu0 %v1902
    %2520 = vmatprep.mubr.bf16.mxu0 %v42
    %2521 = vmatmul.mubr.bf16.gmra.mrb[0].mxu0 %v41
    %v2522 = vpop.f32.mrb[0].mxu0
    %v2523 = vadd.f32 0.0, %v2522
    %v2524 = vpop.f32.mrb[0].mxu0
    %v2525 = vadd.f32 0.0, %v2524
    %v2526 = vpop.f32.mrb[0].mxu0
    %v2527 = vpop.f32.mrb[0].mxu0
    %2528 = vdwg.mxu0
    %2529 = vmatprep.subr.bf16.mxu0 %v1560
    %2530 = vmatpush1.bf16.msra.mxu0 %v1559
    %2531 = vmatprep.subr.bf16.mxu0 %v1583
    %2532 = vmatpush1.bf16.msra.mxu0 %v1582
    %2533 = vmatprep.subr.bf16.mxu0 %v1606
    %2534 = vmatpush1.bf16.msra.mxu0 %v1605
    %2535 = vmatprep.subr.bf16.mxu0 %v1629
    %2536 = vmatpush1.bf16.msra.mxu0 %v1628
    %2537 = vmatprep.subr.bf16.mxu0 %v1652
    %2538 = vmatpush1.bf16.msra.mxu0 %v1651
    %2539 = vmatprep.subr.bf16.mxu0 %v1675
    %2540 = vmatpush1.bf16.msra.mxu0 %v1674
    %2541 = vmatprep.subr.bf16.mxu0 %v1698
    %2542 = vmatpush1.bf16.msra.mxu0 %v1697
    %2543 = vmatprep.subr.bf16.mxu0 %v1721
    %2544 = vmatpush1.bf16.msra.mxu0 %v1720
    %2545 = vmatprep.subr.bf16.mxu0 %v1744
    %2546 = vmatpush1.bf16.msra.mxu0 %v1743
    %2547 = vmatprep.subr.bf16.mxu0 %v1767
    %2548 = vmatpush1.bf16.msra.mxu0 %v1766
    %2549 = vmatprep.subr.bf16.mxu0 %v1790
    %2550 = vmatpush1.bf16.msra.mxu0 %v1789
    %2551 = vmatprep.subr.bf16.mxu0 %v1813
    %2552 = vmatpush1.bf16.msra.mxu0 %v1812
    %2553 = vmatprep.subr.bf16.mxu0 %v1836
    %2554 = vmatpush1.bf16.msra.mxu0 %v1835
    %2555 = vmatprep.subr.bf16.mxu0 %v1859
    %2556 = vmatpush1.bf16.msra.mxu0 %v1858
    %2557 = vmatprep.subr.bf16.mxu0 %v1882
    %2558 = vmatpush1.bf16.msra.mxu0 %v1881
    %2559 = vmatprep.subr.bf16.mxu0 %v1905
    %2560 = vmatpush1.bf16.msra.mxu0 %v1904
    %2561 = vmatprep.mubr.bf16.mxu0 %v42
    %2562 = vmatmul.mubr.bf16.gmra.mrb[0].mxu0 %v41
    %v2563 = vpop.f32.mrb[0].mxu0
    %v2564 = vadd.f32 0.0, %v2563
    %v2565 = vpop.f32.mrb[0].mxu0
    %v2566 = vadd.f32 0.0, %v2565
    %v2567 = vpop.f32.mrb[0].mxu0
    %v2568 = vpop.f32.mrb[0].mxu0
    %2569 = vdwg.mxu0
    %2570 = vmatprep.subr.bf16.mxu0 %v1562
    %2571 = vmatpush1.bf16.msra.mxu0 %v1561
    %2572 = vmatprep.subr.bf16.mxu0 %v1585
    %2573 = vmatpush1.bf16.msra.mxu0 %v1584
    %2574 = vmatprep.subr.bf16.mxu0 %v1608
    %2575 = vmatpush1.bf16.msra.mxu0 %v1607
    %2576 = vmatprep.subr.bf16.mxu0 %v1631
    %2577 = vmatpush1.bf16.msra.mxu0 %v1630
    %2578 = vmatprep.subr.bf16.mxu0 %v1654
    %2579 = vmatpush1.bf16.msra.mxu0 %v1653
    %2580 = vmatprep.subr.bf16.mxu0 %v1677
    %2581 = vmatpush1.bf16.msra.mxu0 %v1676
    %2582 = vmatprep.subr.bf16.mxu0 %v1700
    %2583 = vmatpush1.bf16.msra.mxu0 %v1699
    %2584 = vmatprep.subr.bf16.mxu0 %v1723
    %2585 = vmatpush1.bf16.msra.mxu0 %v1722
    %2586 = vmatprep.subr.bf16.mxu0 %v1746
    %2587 = vmatpush1.bf16.msra.mxu0 %v1745
    %2588 = vmatprep.subr.bf16.mxu0 %v1769
    %2589 = vmatpush1.bf16.msra.mxu0 %v1768
    %2590 = vmatprep.subr.bf16.mxu0 %v1792
    %2591 = vmatpush1.bf16.msra.mxu0 %v1791
    %2592 = vmatprep.subr.bf16.mxu0 %v1815
    %2593 = vmatpush1.bf16.msra.mxu0 %v1814
    %2594 = vmatprep.subr.bf16.mxu0 %v1838
    %2595 = vmatpush1.bf16.msra.mxu0 %v1837
    %2596 = vmatprep.subr.bf16.mxu0 %v1861
    %2597 = vmatpush1.bf16.msra.mxu0 %v1860
    %2598 = vmatprep.subr.bf16.mxu0 %v1884
    %2599 = vmatpush1.bf16.msra.mxu0 %v1883
    %2600 = vmatprep.subr.bf16.mxu0 %v1907
    %2601 = vmatpush1.bf16.msra.mxu0 %v1906
    %2602 = vmatprep.mubr.bf16.mxu0 %v42
    %2603 = vmatmul.mubr.bf16.gmra.mrb[0].mxu0 %v41
    %v2604 = vpop.f32.mrb[0].mxu0
    %v2605 = vadd.f32 0.0, %v2604
    %v2606 = vpop.f32.mrb[0].mxu0
    %v2607 = vadd.f32 0.0, %v2606
    %v2608 = vpop.f32.mrb[0].mxu0
    %v2609 = vpop.f32.mrb[0].mxu0
    %2610 = vdwg.mxu0
    %2611 = vmatprep.subr.bf16.mxu0 %v1564
    %2612 = vmatpush1.bf16.msra.mxu0 %v1563
    %2613 = vmatprep.subr.bf16.mxu0 %v1587
    %2614 = vmatpush1.bf16.msra.mxu0 %v1586
    %2615 = vmatprep.subr.bf16.mxu0 %v1610
    %2616 = vmatpush1.bf16.msra.mxu0 %v1609
    %2617 = vmatprep.subr.bf16.mxu0 %v1633
    %2618 = vmatpush1.bf16.msra.mxu0 %v1632
    %2619 = vmatprep.subr.bf16.mxu0 %v1656
    %2620 = vmatpush1.bf16.msra.mxu0 %v1655
    %2621 = vmatprep.subr.bf16.mxu0 %v1679
    %2622 = vmatpush1.bf16.msra.mxu0 %v1678
    %2623 = vmatprep.subr.bf16.mxu0 %v1702
    %2624 = vmatpush1.bf16.msra.mxu0 %v1701
    %2625 = vmatprep.subr.bf16.mxu0 %v1725
    %2626 = vmatpush1.bf16.msra.mxu0 %v1724
    %2627 = vmatprep.subr.bf16.mxu0 %v1748
    %2628 = vmatpush1.bf16.msra.mxu0 %v1747
    %2629 = vmatprep.subr.bf16.mxu0 %v1771
    %2630 = vmatpush1.bf16.msra.mxu0 %v1770
    %2631 = vmatprep.subr.bf16.mxu0 %v1794
    %2632 = vmatpush1.bf16.msra.mxu0 %v1793
    %2633 = vmatprep.subr.bf16.mxu0 %v1817
    %2634 = vmatpush1.bf16.msra.mxu0 %v1816
    %2635 = vmatprep.subr.bf16.mxu0 %v1840
    %2636 = vmatpush1.bf16.msra.mxu0 %v1839
    %2637 = vmatprep.subr.bf16.mxu0 %v1863
    %2638 = vmatpush1.bf16.msra.mxu0 %v1862
    %2639 = vmatprep.subr.bf16.mxu0 %v1886
    %2640 = vmatpush1.bf16.msra.mxu0 %v1885
    %2641 = vmatprep.subr.bf16.mxu0 %v1909
    %2642 = vmatpush1.bf16.msra.mxu0 %v1908
    %2643 = vmatprep.mubr.bf16.mxu0 %v42
    %2644 = vmatmul.mubr.bf16.gmra.mrb[0].mxu0 %v41
    %v2645 = vpop.f32.mrb[0].mxu0
    %v2646 = vadd.f32 0.0, %v2645
    %v2647 = vpop.f32.mrb[0].mxu0
    %v2648 = vadd.f32 0.0, %v2647
    %v2649 = vpop.f32.mrb[0].mxu0
    %v2650 = vpop.f32.mrb[0].mxu0
    %2651 = vdwg.mxu0
    %2652 = vmatprep.subr.bf16.mxu0 %v1566
    %2653 = vmatpush1.bf16.msra.mxu0 %v1565
    %2654 = vmatprep.subr.bf16.mxu0 %v1589
    %2655 = vmatpush1.bf16.msra.mxu0 %v1588
    %2656 = vmatprep.subr.bf16.mxu0 %v1612
    %2657 = vmatpush1.bf16.msra.mxu0 %v1611
    %2658 = vmatprep.subr.bf16.mxu0 %v1635
    %2659 = vmatpush1.bf16.msra.mxu0 %v1634
    %2660 = vmatprep.subr.bf16.mxu0 %v1658
    %2661 = vmatpush1.bf16.msra.mxu0 %v1657
    %2662 = vmatprep.subr.bf16.mxu0 %v1681
    %2663 = vmatpush1.bf16.msra.mxu0 %v1680
    %2664 = vmatprep.subr.bf16.mxu0 %v1704
    %2665 = vmatpush1.bf16.msra.mxu0 %v1703
    %2666 = vmatprep.subr.bf16.mxu0 %v1727
    %2667 = vmatpush1.bf16.msra.mxu0 %v1726
    %2668 = vmatprep.subr.bf16.mxu0 %v1750
    %2669 = vmatpush1.bf16.msra.mxu0 %v1749
    %2670 = vmatprep.subr.bf16.mxu0 %v1773
    %2671 = vmatpush1.bf16.msra.mxu0 %v1772
    %2672 = vmatprep.subr.bf16.mxu0 %v1796
    %2673 = vmatpush1.bf16.msra.mxu0 %v1795
    %2674 = vmatprep.subr.bf16.mxu0 %v1819
    %2675 = vmatpush1.bf16.msra.mxu0 %v1818
    %2676 = vmatprep.subr.bf16.mxu0 %v1842
    %2677 = vmatpush1.bf16.msra.mxu0 %v1841
    %2678 = vmatprep.subr.bf16.mxu0 %v1865
    %2679 = vmatpush1.bf16.msra.mxu0 %v1864
    %2680 = vmatprep.subr.bf16.mxu0 %v1888
    %2681 = vmatpush1.bf16.msra.mxu0 %v1887
    %2682 = vmatprep.subr.bf16.mxu0 %v1911
    %2683 = vmatpush1.bf16.msra.mxu0 %v1910
    %2684 = vmatprep.mubr.bf16.mxu0 %v42
    %2685 = vmatmul.mubr.bf16.gmra.mrb[0].mxu0 %v41
    %v2686 = vpop.f32.mrb[0].mxu0
    %v2687 = vadd.f32 0.0, %v2686
    %v2688 = vpop.f32.mrb[0].mxu0
    %v2689 = vadd.f32 0.0, %v2688
    %v2690 = vpop.f32.mrb[0].mxu0
    %v2691 = vpop.f32.mrb[0].mxu0
    %2692 = vdwg.mxu0
    %2693 = vmatprep.subr.bf16.mxu0 %v1568
    %2694 = vmatpush1.bf16.msra.mxu0 %v1567
    %2695 = vmatprep.subr.bf16.mxu0 %v1591
    %2696 = vmatpush1.bf16.msra.mxu0 %v1590
    %2697 = vmatprep.subr.bf16.mxu0 %v1614
    %2698 = vmatpush1.bf16.msra.mxu0 %v1613
    %2699 = vmatprep.subr.bf16.mxu0 %v1637
    %2700 = vmatpush1.bf16.msra.mxu0 %v1636
    %2701 = vmatprep.subr.bf16.mxu0 %v1660
    %2702 = vmatpush1.bf16.msra.mxu0 %v1659
    %2703 = vmatprep.subr.bf16.mxu0 %v1683
    %2704 = vmatpush1.bf16.msra.mxu0 %v1682
    %2705 = vmatprep.subr.bf16.mxu0 %v1706
    %2706 = vmatpush1.bf16.msra.mxu0 %v1705
    %2707 = vmatprep.subr.bf16.mxu0 %v1729
    %2708 = vmatpush1.bf16.msra.mxu0 %v1728
    %2709 = vmatprep.subr.bf16.mxu0 %v1752
    %2710 = vmatpush1.bf16.msra.mxu0 %v1751
    %2711 = vmatprep.subr.bf16.mxu0 %v1775
    %2712 = vmatpush1.bf16.msra.mxu0 %v1774
    %2713 = vmatprep.subr.bf16.mxu0 %v1798
    %2714 = vmatpush1.bf16.msra.mxu0 %v1797
    %2715 = vmatprep.subr.bf16.mxu0 %v1821
    %2716 = vmatpush1.bf16.msra.mxu0 %v1820
    %2717 = vmatprep.subr.bf16.mxu0 %v1844
    %2718 = vmatpush1.bf16.msra.mxu0 %v1843
    %2719 = vmatprep.subr.bf16.mxu0 %v1867
    %2720 = vmatpush1.bf16.msra.mxu0 %v1866
    %2721 = vmatprep.subr.bf16.mxu0 %v1890
    %2722 = vmatpush1.bf16.msra.mxu0 %v1889
    %2723 = vmatprep.subr.bf16.mxu0 %v1913
    %2724 = vmatpush1.bf16.msra.mxu0 %v1912
    %2725 = vmatprep.mubr.bf16.mxu0 %v42
    %2726 = vmatmul.mubr.bf16.gmra.mrb[0].mxu0 %v41
    %v2727 = vpop.f32.mrb[0].mxu0
    %v2728 = vadd.f32 0.0, %v2727
    %v2729 = vpop.f32.mrb[0].mxu0
    %v2730 = vadd.f32 0.0, %v2729
    %v2731 = vpop.f32.mrb[0].mxu0
    %v2732 = vpop.f32.mrb[0].mxu0
    %2733 = vdwg.mxu0
    %2734 = vmatprep.subr.bf16.mxu0 0
    %2735 = vmatpush1.bf16.msra.mxu0 %v1569
    %2736 = vmatprep.subr.bf16.mxu0 0
    %2737 = vmatpush1.bf16.msra.mxu0 %v1592
    %2738 = vmatprep.subr.bf16.mxu0 0
    %2739 = vmatpush1.bf16.msra.mxu0 %v1615
    %2740 = vmatprep.subr.bf16.mxu0 0
    %2741 = vmatpush1.bf16.msra.mxu0 %v1638
    %2742 = vmatprep.subr.bf16.mxu0 0
    %2743 = vmatpush1.bf16.msra.mxu0 %v1661
    %2744 = vmatprep.subr.bf16.mxu0 0
    %2745 = vmatpush1.bf16.msra.mxu0 %v1684
    %2746 = vmatprep.subr.bf16.mxu0 0
    %2747 = vmatpush1.bf16.msra.mxu0 %v1707
    %2748 = vmatprep.subr.bf16.mxu0 0
    %2749 = vmatpush1.bf16.msra.mxu0 %v1730
    %2750 = vmatprep.subr.bf16.mxu0 0
    %2751 = vmatpush1.bf16.msra.mxu0 %v1753
    %2752 = vmatprep.subr.bf16.mxu0 0
    %2753 = vmatpush1.bf16.msra.mxu0 %v1776
    %2754 = vmatprep.subr.bf16.mxu0 0
    %2755 = vmatpush1.bf16.msra.mxu0 %v1799
    %2756 = vmatprep.subr.bf16.mxu0 0
    %2757 = vmatpush1.bf16.msra.mxu0 %v1822
    %2758 = vmatprep.subr.bf16.mxu0 0
    %2759 = vmatpush1.bf16.msra.mxu0 %v1845
    %2760 = vmatprep.subr.bf16.mxu0 0
    %2761 = vmatpush1.bf16.msra.mxu0 %v1868
    %2762 = vmatprep.subr.bf16.mxu0 0
    %2763 = vmatpush1.bf16.msra.mxu0 %v1891
    %2764 = vmatprep.subr.bf16.mxu0 0
    %2765 = vmatpush1.bf16.msra.mxu0 %v1914
    %2766 = vmatprep.mubr.bf16.mxu0 %v42
    %2767 = vmatmul.mubr.bf16.gmra.mrb[0].mxu0 %v41
    %v2768 = vpop.f32.mrb[0].mxu0
    %v2769 = vadd.f32 0.0, %v2768
    %v2770 = vpop.f32.mrb[0].mxu0
    %v2771 = vpop.f32.mrb[0].mxu0
    %v2772 = vpop.f32.mrb[0].mxu0
    %2773 = vdwg.mxu0
    %2774 = vst [vmem:[#allocation7] sm:$0xff] %v2318
    %2775 = vst [vmem:[#allocation7 + $0x8] sm:$0xff] %v2320
    %2776 = vst [vmem:[#allocation7 + $0x10] sm:$0xff] %v2359
    %2777 = vst [vmem:[#allocation7 + $0x18] sm:$0xff] %v2361
    %2778 = vst [vmem:[#allocation7 + $0x20] sm:$0xff] %v2400
    %2779 = vst [vmem:[#allocation7 + $0x28] sm:$0xff] %v2402
    %2780 = vst [vmem:[#allocation7 + $0x30] sm:$0xff] %v2441
    %2781 = vst [vmem:[#allocation7 + $0x38] sm:$0xff] %v2443
    %2782 = vst [vmem:[#allocation7 + $0x40] sm:$0xff] %v2482
    %2783 = vst [vmem:[#allocation7 + $0x48] sm:$0xff] %v2484
    %2784 = vst [vmem:[#allocation7 + $0x50] sm:$0xff] %v2523
    %2785 = vst [vmem:[#allocation7 + $0x58] sm:$0xff] %v2525
    %2786 = vst [vmem:[#allocation7 + $0x60] sm:$0xff] %v2564
    %2787 = vst [vmem:[#allocation7 + $0x68] sm:$0xff] %v2566
    %2788 = vst [vmem:[#allocation7 + $0x70] sm:$0xff] %v2605
    %2789 = vst [vmem:[#allocation7 + $0x78] sm:$0xff] %v2607
    %2790 = vst [vmem:[#allocation7 + $0x80] sm:$0xff] %v2646
    %2791 = vst [vmem:[#allocation7 + $0x88] sm:$0xff] %v2648
    %2792 = vst [vmem:[#allocation7 + $0x90] sm:$0xff] %v2687
    %2793 = vst [vmem:[#allocation7 + $0x98] sm:$0xff] %v2689
    %2794 = vst [vmem:[#allocation7 + $0xa0] sm:$0xff] %v2728
    %2795 = vst [vmem:[#allocation7 + $0xa8] sm:$0xff] %v2730
    %2796 = vst [vmem:[#allocation7 + $0xb0] sm:$0xff] %v2769
    // Predicated region
    $region18: #{fwd.1} parent=1 // pred_check
      _
    $region19: #{fwd.1} parent=1 // pred_check_branch
      %2798 = sbr.rel (0) target = $region21
    $region20: #{fwd.1} parent=1 // pred_region
      %s2800 = ssub.s32 2944, 2944
      %2801 = vsyncadd [#allocation4], %s2800
      %s2803 = sshll.u32 [#allocation7], 4
      %s2804 = int_to_ptr.vmem [resolvable:$true] %s2803
      %2806 = dma.vmem_to_hbm [thread:$0]  %s2804, 2944, %s2, [#allocation4]
    $region21: #{fwd.1} parent=1 // pred_fallthru
      _
    // Predicated region
    $region22: #{fwd.1} parent=1 // pred_check
      _
    $region23: #{fwd.1} parent=1 // pred_check_branch
      %2808 = sbr.rel (0) target = $region25
    $region24: #{fwd.1} parent=1 // pred_region
      %2809 = dma.done [#allocation4], 2944
    $region25: #{fwd.1} parent=1 // pred_fallthru
      _
    %2810 = vsyncpa [#allocation3], 1
    %2811 = vsyncpa [#allocation6], 1
    %2812 = vsyncpa [#allocation4], 1

</llo_original>
